<compile_context>
chip_gen: v6e
topology: v6e:2x2x1
jax: 0.10.0
libtpu: 0.0.40
codegen_flags: <defaults>
</compile_context>

<pallas_src>
import jax
import jax.numpy as jnp
from jax.experimental import pallas as pl
from jax.experimental.pallas import tpu as pltpu

N_EMBD = 64
N_HEADS = 4
HEAD_SIZE = N_EMBD // N_HEADS
BLOCK_SIZE = 64
LN_EPS = 1e-5


def _layernorm(x, gamma, beta):
    # x: (M, C); gamma/beta: (1, C); fp32 math
    mean = jnp.mean(x, axis=-1, keepdims=True)
    var = jnp.mean((x - mean) ** 2, axis=-1, keepdims=True)
    inv = jax.lax.rsqrt(var + LN_EPS)
    return (x - mean) * inv * gamma + beta


def decoder_block_kernel(
    x_ref,
    wqkv_ref, wproj_ref, bproj_ref,
    wf1_ref, bf1_ref, wf2_ref, bf2_ref,
    ln1_g_ref, ln1_b_ref, ln2_g_ref, ln2_b_ref,
    o_ref,
):
    BB, T, C = x_ref.shape
    M = BB * T

    x = x_ref[...].astype(jnp.float32).reshape(M, C)       # (M, C) slab

    # ---- LayerNorm 1 (fp32) ----
    h = _layernorm(x, ln1_g_ref[...], ln1_b_ref[...])

    # ---- fused QKV projection: one (M, C) @ (C, 3C) bf16 matmul ----
    qkv = jnp.dot(h.astype(jnp.bfloat16), wqkv_ref[...],
                  preferred_element_type=jnp.float32)       # (M, 3C)
    q = qkv[:, :C].reshape(BB, T, C)
    k = qkv[:, C:2 * C].reshape(BB, T, C)
    v = qkv[:, 2 * C:].reshape(BB, T, C)

    # causal mask, shared across the batch block
    row = jax.lax.broadcasted_iota(jnp.int32, (T, T), 0)
    col = jax.lax.broadcasted_iota(jnp.int32, (T, T), 1)
    causal = (row >= col)[None, :, :]                       # (1, T, T)

    scale = HEAD_SIZE ** -0.5

    # Per-head attention; each head's output is accumulated directly into the
    # output projection (avoids jnp.concatenate + relayout of lane-narrow
    # (T, 16) tiles).
    proj_acc = jnp.zeros((M, C), jnp.float32)
    for hidx in range(N_HEADS):
        lo = hidx * HEAD_SIZE
        qh = q[:, :, lo:lo + HEAD_SIZE].astype(jnp.bfloat16)   # (BB, T, hs)
        kh = k[:, :, lo:lo + HEAD_SIZE].astype(jnp.bfloat16)
        vh = v[:, :, lo:lo + HEAD_SIZE].astype(jnp.bfloat16)

        wei = jnp.einsum("btd,bsd->bts", qh, kh,
                         preferred_element_type=jnp.float32) * scale
        wei = jnp.where(causal, wei, -jnp.inf)
        wei = wei - jnp.max(wei, axis=-1, keepdims=True)
        wei = jnp.exp(wei)
        wei = wei * pl.reciprocal(jnp.sum(wei, axis=-1, keepdims=True),
                                  approx=True)
        oh = jnp.einsum("bts,bsd->btd", wei.astype(jnp.bfloat16), vh,
                        preferred_element_type=jnp.float32)    # (BB, T, hs)

        proj_acc = proj_acc + jnp.dot(
            oh.reshape(M, HEAD_SIZE).astype(jnp.bfloat16),
            wproj_ref[pl.ds(lo, HEAD_SIZE), :],
            preferred_element_type=jnp.float32)

    attn = proj_acc + bproj_ref[...]
    # TODO(synk): dropout (p=0.2) omitted -> identity (inference semantics).

    x1 = x + attn                                           # residual 1

    # ---- LayerNorm 2 + FeedForward (bf16 matmuls, fp32 accumulation) ----
    h2 = _layernorm(x1, ln2_g_ref[...], ln2_b_ref[...])
    ff = jnp.dot(h2.astype(jnp.bfloat16), wf1_ref[...],
                 preferred_element_type=jnp.float32) + bf1_ref[...]
    ff = jnp.maximum(ff, 0.0)                               # ReLU
    ff = jnp.dot(ff.astype(jnp.bfloat16), wf2_ref[...],
                 preferred_element_type=jnp.float32) + bf2_ref[...]
    # TODO(synk): dropout (p=0.2) omitted -> identity (inference semantics).

    o_ref[...] = (x1 + ff).reshape(BB, T, C).astype(o_ref.dtype)  # residual 2


def _pick_batch_block(B, max_bb):
    """Largest divisor of B that is <= max_bb (keeps the grid exact)."""
    for bb in range(min(B, max_bb), 0, -1):
        if B % bb == 0:
            return bb
    return 1


def decoder_block(x, params, *, max_bb=16):
    (wq, wk, wv, wproj, bproj, wf1, bf1, wf2, bf2,
     ln1_g, ln1_b, ln2_g, ln2_b) = params
    B, T, C = x.shape
    assert C == N_EMBD and T <= BLOCK_SIZE

    BB = _pick_batch_block(B, max_bb)
    grid = (B // BB,)

    # Fused QKV weight; bf16 operands for every MXU matmul.
    wqkv = jnp.concatenate([wq, wk, wv], axis=-1).astype(jnp.bfloat16)
    wproj_b = wproj.astype(jnp.bfloat16)
    wf1_b = wf1.astype(jnp.bfloat16)
    wf2_b = wf2.astype(jnp.bfloat16)

    full = lambda shape: pl.BlockSpec(shape, lambda b: (0,) * len(shape))

    in_specs = [
        pl.BlockSpec((BB, T, C), lambda b: (b, 0, 0)),      # x
        full((C, 3 * C)),                                   # wqkv
        full((C, C)), full((1, C)),                         # wproj, bproj
        full((C, 4 * C)), full((1, 4 * C)),                 # wf1, bf1
        full((4 * C, C)), full((1, C)),                     # wf2, bf2
        full((1, C)), full((1, C)),                         # ln1 gamma/beta
        full((1, C)), full((1, C)),                         # ln2 gamma/beta
    ]

    return pl.pallas_call(
        decoder_block_kernel,
        out_shape=jax.ShapeDtypeStruct((B, T, C), x.dtype),
        grid_spec=pltpu.PrefetchScalarGridSpec(
            num_scalar_prefetch=0,
            grid=grid,
            in_specs=in_specs,
            out_specs=pl.BlockSpec((BB, T, C), lambda b: (b, 0, 0)),
        ),
        compiler_params=pltpu.CompilerParams(
            dimension_semantics=("parallel",)),
    )(x, wqkv, wproj_b, bproj, wf1_b, bf1, wf2_b, bf2,
      ln1_g, ln1_b, ln2_g, ln2_b)


def make_params(key):
    """Deterministic synthetic parameters (shapes match the torch module)."""
    C = N_EMBD
    keys = jax.random.split(key, 8)

    def w(k, shape, fan_in):
        return jax.random.normal(k, shape, jnp.float32) / jnp.sqrt(fan_in)

    wq = w(keys[0], (C, C), C)        # concat of per-head q weights (in, out)
    wk = w(keys[1], (C, C), C)
    wv = w(keys[2], (C, C), C)
    wproj = w(keys[3], (C, C), C)
    bproj = jnp.zeros((1, C), jnp.float32)
    wf1 = w(keys[4], (C, 4 * C), C)
    bf1 = 0.01 * jnp.ones((1, 4 * C), jnp.float32)
    wf2 = w(keys[5], (4 * C, C), 4 * C)
    bf2 = 0.01 * jnp.ones((1, C), jnp.float32)
    ln1_g = jnp.ones((1, C), jnp.float32)
    ln1_b = jnp.zeros((1, C), jnp.float32)
    ln2_g = jnp.ones((1, C), jnp.float32)
    ln2_b = jnp.zeros((1, C), jnp.float32)
    return (wq, wk, wv, wproj, bproj, wf1, bf1, wf2, bf2,
            ln1_g, ln1_b, ln2_g, ln2_b)


def _reference(x, params):
    """Pure-JAX fp32 reference for a sanity check."""
    (wq, wk, wv, wproj, bproj, wf1, bf1, wf2, bf2,
     ln1_g, ln1_b, ln2_g, ln2_b) = params
    B, T, C = x.shape

    def ln(v, g, b):
        m = v.mean(-1, keepdims=True)
        s = ((v - m) ** 2).mean(-1, keepdims=True)
        return (v - m) / jnp.sqrt(s + LN_EPS) * g + b

    h = ln(x, ln1_g, ln1_b)
    q = h @ wq; k = h @ wk; v = h @ wv
    q = q.reshape(B, T, N_HEADS, HEAD_SIZE).transpose(0, 2, 1, 3)
    k = k.reshape(B, T, N_HEADS, HEAD_SIZE).transpose(0, 2, 1, 3)
    v = v.reshape(B, T, N_HEADS, HEAD_SIZE).transpose(0, 2, 1, 3)
    wei = jnp.einsum("bhtd,bhsd->bhts", q, k) * HEAD_SIZE ** -0.5
    mask = jnp.tril(jnp.ones((T, T), bool))
    wei = jnp.where(mask, wei, -jnp.inf)
    wei = jax.nn.softmax(wei, axis=-1)
    attn = jnp.einsum("bhts,bhsd->bhtd", wei, v)
    attn = attn.transpose(0, 2, 1, 3).reshape(B, T, C)
    attn = attn @ wproj + bproj
    x1 = x + attn
    h2 = ln(x1, ln2_g, ln2_b)
    ff = jnp.maximum(h2 @ wf1 + bf1, 0.0) @ wf2 + bf2
    return x1 + ff


if __name__ == "__main__":
    key = jax.random.PRNGKey(0)
    kx, kp = jax.random.split(key)

    B, T, C = 2, 8, N_EMBD
    x = jax.random.normal(kx, (B, T, C), jnp.float32)
    params = make_params(kp)

    out = decoder_block(x, params)
    out = jax.block_until_ready(out)

    ref = _reference(x, params)
    assert out.shape == (B, T, C)
    # bf16 matmul operands with fp32 accumulation -> loosened tolerance.
    assert jnp.allclose(out, ref, atol=5e-2, rtol=5e-2), "mismatch vs reference"

    print("KERNEL_OK")
</pallas_src>

<mosaic_0001>
module attributes {stable_mosaic.version = 11 : i64} {
  func.func @decoder_block_kernel(%arg0: i32, %arg1: memref<2x8x64xf32, #tpu.memory_space<vmem>>, %arg2: memref<64x192xbf16, #tpu.memory_space<vmem>>, %arg3: memref<64x64xbf16, #tpu.memory_space<vmem>>, %arg4: memref<1x64xf32, #tpu.memory_space<vmem>>, %arg5: memref<64x256xbf16, #tpu.memory_space<vmem>>, %arg6: memref<1x256xf32, #tpu.memory_space<vmem>>, %arg7: memref<256x64xbf16, #tpu.memory_space<vmem>>, %arg8: memref<1x64xf32, #tpu.memory_space<vmem>>, %arg9: memref<1x64xf32, #tpu.memory_space<vmem>>, %arg10: memref<1x64xf32, #tpu.memory_space<vmem>>, %arg11: memref<1x64xf32, #tpu.memory_space<vmem>>, %arg12: memref<1x64xf32, #tpu.memory_space<vmem>>, %arg13: memref<2x8x64xf32, #tpu.memory_space<vmem>>) attributes {dimension_semantics = [#tpu.dimension_semantics<parallel>], iteration_bounds = array<i64: 1>, scalar_prefetch = 0 : i64, scratch_operands = 0 : i64, tpu.core_type = #tpu.core_type<tc>, window_params = [{transform_indices = @transform_0, window_bounds = array<i64: 2, 8, 64>}, {pipeline_mode = #tpu.pipeline_mode<synchronous>, transform_indices = @transform_1, window_bounds = array<i64: 64, 192>}, {pipeline_mode = #tpu.pipeline_mode<synchronous>, transform_indices = @transform_2, window_bounds = array<i64: 64, 64>}, {pipeline_mode = #tpu.pipeline_mode<synchronous>, transform_indices = @transform_3, window_bounds = array<i64: 1, 64>}, {pipeline_mode = #tpu.pipeline_mode<synchronous>, transform_indices = @transform_4, window_bounds = array<i64: 64, 256>}, {pipeline_mode = #tpu.pipeline_mode<synchronous>, transform_indices = @transform_5, window_bounds = array<i64: 1, 256>}, {pipeline_mode = #tpu.pipeline_mode<synchronous>, transform_indices = @transform_6, window_bounds = array<i64: 256, 64>}, {pipeline_mode = #tpu.pipeline_mode<synchronous>, transform_indices = @transform_7, window_bounds = array<i64: 1, 64>}, {pipeline_mode = #tpu.pipeline_mode<synchronous>, transform_indices = @transform_8, window_bounds = array<i64: 1, 64>}, {pipeline_mode = #tpu.pipeline_mode<synchronous>, transform_indices = @transform_9, window_bounds = array<i64: 1, 64>}, {pipeline_mode = #tpu.pipeline_mode<synchronous>, transform_indices = @transform_10, window_bounds = array<i64: 1, 64>}, {pipeline_mode = #tpu.pipeline_mode<synchronous>, transform_indices = @transform_11, window_bounds = array<i64: 1, 64>}, {transform_indices = @transform_12, window_bounds = array<i64: 2, 8, 64>}]} {
    %c0 = arith.constant 0 : index
    %c0_0 = arith.constant 0 : index
    %c0_1 = arith.constant 0 : index
    %0 = vector.load %arg1[%c0, %c0_0, %c0_1] : memref<2x8x64xf32, #tpu.memory_space<vmem>>, vector<2x8x64xf32>
    %1 = vector.shape_cast %0 : vector<2x8x64xf32> to vector<16x64xf32>
    %c0_2 = arith.constant 0 : index
    %c0_3 = arith.constant 0 : index
    %2 = vector.load %arg9[%c0_2, %c0_3] : memref<1x64xf32, #tpu.memory_space<vmem>>, vector<1x64xf32>
    %c0_4 = arith.constant 0 : index
    %c0_5 = arith.constant 0 : index
    %3 = vector.load %arg10[%c0_4, %c0_5] : memref<1x64xf32, #tpu.memory_space<vmem>>, vector<1x64xf32>
    %cst = arith.constant dense<0.000000e+00> : vector<16xf32>
    %4 = vector.multi_reduction <add>, %1, %cst [1] : vector<16x64xf32> to vector<16xf32>
    %5 = vector.shape_cast %4 : vector<16xf32> to vector<16x1xf32>
    %cst_6 = arith.constant 6.400000e+01 : f32
    %6 = vector.broadcast %cst_6 : f32 to vector<16x1xf32>
    %7 = arith.divf %5, %6 : vector<16x1xf32>
    %8 = vector.broadcast %7 : vector<16x1xf32> to vector<16x64xf32>
    %9 = arith.subf %1, %8 : vector<16x64xf32>
    %10 = arith.mulf %9, %9 : vector<16x64xf32>
    %cst_7 = arith.constant dense<0.000000e+00> : vector<16xf32>
    %11 = vector.multi_reduction <add>, %10, %cst_7 [1] : vector<16x64xf32> to vector<16xf32>
    %12 = vector.shape_cast %11 : vector<16xf32> to vector<16x1xf32>
    %cst_8 = arith.constant 6.400000e+01 : f32
    %13 = vector.broadcast %cst_8 : f32 to vector<16x1xf32>
    %14 = arith.divf %12, %13 : vector<16x1xf32>
    %cst_9 = arith.constant 9.99999974E-6 : f32
    %15 = vector.broadcast %cst_9 : f32 to vector<16x1xf32>
    %16 = arith.addf %14, %15 : vector<16x1xf32>
    %17 = math.rsqrt %16 : vector<16x1xf32>
    %18 = vector.broadcast %7 : vector<16x1xf32> to vector<16x64xf32>
    %19 = arith.subf %1, %18 : vector<16x64xf32>
    %20 = vector.broadcast %17 : vector<16x1xf32> to vector<16x64xf32>
    %21 = arith.mulf %19, %20 : vector<16x64xf32>
    %22 = vector.broadcast %2 : vector<1x64xf32> to vector<16x64xf32>
    %23 = arith.mulf %21, %22 : vector<16x64xf32>
    %24 = vector.broadcast %3 : vector<1x64xf32> to vector<16x64xf32>
    %25 = arith.addf %23, %24 : vector<16x64xf32>
    %26 = arith.truncf %25 : vector<16x64xf32> to vector<16x64xbf16>
    %c0_10 = arith.constant 0 : index
    %c0_11 = arith.constant 0 : index
    %27 = vector.load %arg2[%c0_10, %c0_11] : memref<64x192xbf16, #tpu.memory_space<vmem>>, vector<64x192xbf16>
    %cst_12 = arith.constant dense<0.000000e+00> : vector<16x192xf32>
    %28 = tpu.matmul %26, %27, %cst_12 {dimension_numbers = #tpu.dot_dimension_numbers<[1], [0], [0], [1], [0, 0, 1, 1], [], []>} : vector<16x64xbf16>, vector<64x192xbf16>, vector<16x192xf32> -> vector<16x192xf32>
    %29 = vector.extract_strided_slice %28 {offsets = [0, 0], sizes = [16, 64], strides = [1, 1]} : vector<16x192xf32> to vector<16x64xf32>
    %30 = vector.shape_cast %29 : vector<16x64xf32> to vector<2x8x64xf32>
    %31 = vector.extract_strided_slice %28 {offsets = [0, 64], sizes = [16, 64], strides = [1, 1]} : vector<16x192xf32> to vector<16x64xf32>
    %32 = vector.shape_cast %31 : vector<16x64xf32> to vector<2x8x64xf32>
    %33 = vector.extract_strided_slice %28 {offsets = [0, 128], sizes = [16, 64], strides = [1, 1]} : vector<16x192xf32> to vector<16x64xf32>
    %34 = vector.shape_cast %33 : vector<16x64xf32> to vector<2x8x64xf32>
    %35 = tpu.iota {dimensions = array<i32: 0>} : vector<8x8xi32>
    %36 = tpu.iota {dimensions = array<i32: 1>} : vector<8x8xi32>
    %37 = arith.cmpi sge, %35, %36 : vector<8x8xi32>
    %38 = vector.shape_cast %37 : vector<8x8xi1> to vector<1x8x8xi1>
    %cst_13 = arith.constant 0.000000e+00 : f32
    %39 = vector.broadcast %cst_13 : f32 to vector<16x64xf32>
    %40 = vector.extract_strided_slice %30 {offsets = [0, 0, 0], sizes = [2, 8, 16], strides = [1, 1, 1]} : vector<2x8x64xf32> to vector<2x8x16xf32>
    %41 = arith.truncf %40 : vector<2x8x16xf32> to vector<2x8x16xbf16>
    %42 = vector.extract_strided_slice %32 {offsets = [0, 0, 0], sizes = [2, 8, 16], strides = [1, 1, 1]} : vector<2x8x64xf32> to vector<2x8x16xf32>
    %43 = arith.truncf %42 : vector<2x8x16xf32> to vector<2x8x16xbf16>
    %44 = vector.extract_strided_slice %34 {offsets = [0, 0, 0], sizes = [2, 8, 16], strides = [1, 1, 1]} : vector<2x8x64xf32> to vector<2x8x16xf32>
    %45 = arith.truncf %44 : vector<2x8x16xf32> to vector<2x8x16xbf16>
    "tpu.trace_start"() <{level = 10 : i32, message = "btd,bsd->bts"}> : () -> ()
    %cst_14 = arith.constant dense<0.000000e+00> : vector<2x8x8xf32>
    %46 = tpu.matmul %41, %43, %cst_14 {dimension_numbers = #tpu.dot_dimension_numbers<[2], [2], [1], [1], [0, 0, 0, 1, 1, 1], [0], [0]>} : vector<2x8x16xbf16>, vector<2x8x16xbf16>, vector<2x8x8xf32> -> vector<2x8x8xf32>
    "tpu.trace_stop"() : () -> ()
    %cst_15 = arith.constant 2.500000e-01 : f32
    %47 = vector.broadcast %cst_15 : f32 to vector<2x8x8xf32>
    %48 = arith.mulf %46, %47 : vector<2x8x8xf32>
    %cst_16 = arith.constant 0xFF800000 : f32
    %49 = vector.shape_cast %38 : vector<1x8x8xi1> to vector<1x8x8xi1>
    %50 = vector.broadcast %49 : vector<1x8x8xi1> to vector<2x8x8xi1>
    %51 = vector.broadcast %cst_16 : f32 to vector<2x8x8xf32>
    %52 = arith.select %50, %48, %51 : vector<2x8x8xi1>, vector<2x8x8xf32>
    %cst_17 = arith.constant dense<0xFF800000> : vector<2x8xf32>
    %53 = vector.multi_reduction <maximumf>, %52, %cst_17 [2] : vector<2x8x8xf32> to vector<2x8xf32>
    %54 = vector.shape_cast %53 : vector<2x8xf32> to vector<2x8x1xf32>
    %55 = vector.broadcast %54 : vector<2x8x1xf32> to vector<2x8x8xf32>
    %56 = arith.subf %52, %55 : vector<2x8x8xf32>
    %57 = math.exp %56 : vector<2x8x8xf32>
    %cst_18 = arith.constant dense<0.000000e+00> : vector<2x8xf32>
    %58 = vector.multi_reduction <add>, %57, %cst_18 [2] : vector<2x8x8xf32> to vector<2x8xf32>
    %59 = vector.shape_cast %58 : vector<2x8xf32> to vector<2x8x1xf32>
    %60 = tpu.reciprocal %59 {approx = true} : vector<2x8x1xf32> -> vector<2x8x1xf32>
    %61 = vector.broadcast %60 : vector<2x8x1xf32> to vector<2x8x8xf32>
    %62 = arith.mulf %57, %61 : vector<2x8x8xf32>
    %63 = arith.truncf %62 : vector<2x8x8xf32> to vector<2x8x8xbf16>
    "tpu.trace_start"() <{level = 10 : i32, message = "bts,bsd->btd"}> : () -> ()
    %cst_19 = arith.constant dense<0.000000e+00> : vector<2x8x16xf32>
    %64 = tpu.matmul %63, %45, %cst_19 {dimension_numbers = #tpu.dot_dimension_numbers<[2], [1], [1], [2], [0, 0, 0, 1, 1, 2], [0], [0]>} : vector<2x8x8xbf16>, vector<2x8x16xbf16>, vector<2x8x16xf32> -> vector<2x8x16xf32>
    "tpu.trace_stop"() : () -> ()
    %65 = vector.shape_cast %64 : vector<2x8x16xf32> to vector<16x16xf32>
    %66 = arith.truncf %65 : vector<16x16xf32> to vector<16x16xbf16>
    %c0_20 = arith.constant 0 : index
    %c0_21 = arith.constant 0 : index
    %67 = vector.load %arg3[%c0_20, %c0_21] : memref<64x64xbf16, #tpu.memory_space<vmem>>, vector<16x64xbf16>
    %cst_22 = arith.constant dense<0.000000e+00> : vector<16x64xf32>
    %68 = tpu.matmul %66, %67, %cst_22 {dimension_numbers = #tpu.dot_dimension_numbers<[1], [0], [0], [1], [0, 0, 1, 1], [], []>} : vector<16x16xbf16>, vector<16x64xbf16>, vector<16x64xf32> -> vector<16x64xf32>
    %69 = arith.addf %39, %68 : vector<16x64xf32>
    %70 = vector.extract_strided_slice %30 {offsets = [0, 0, 16], sizes = [2, 8, 16], strides = [1, 1, 1]} : vector<2x8x64xf32> to vector<2x8x16xf32>
    %71 = arith.truncf %70 : vector<2x8x16xf32> to vector<2x8x16xbf16>
    %72 = vector.extract_strided_slice %32 {offsets = [0, 0, 16], sizes = [2, 8, 16], strides = [1, 1, 1]} : vector<2x8x64xf32> to vector<2x8x16xf32>
    %73 = arith.truncf %72 : vector<2x8x16xf32> to vector<2x8x16xbf16>
    %74 = vector.extract_strided_slice %34 {offsets = [0, 0, 16], sizes = [2, 8, 16], strides = [1, 1, 1]} : vector<2x8x64xf32> to vector<2x8x16xf32>
    %75 = arith.truncf %74 : vector<2x8x16xf32> to vector<2x8x16xbf16>
    "tpu.trace_start"() <{level = 10 : i32, message = "btd,bsd->bts"}> : () -> ()
    %cst_23 = arith.constant dense<0.000000e+00> : vector<2x8x8xf32>
    %76 = tpu.matmul %71, %73, %cst_23 {dimension_numbers = #tpu.dot_dimension_numbers<[2], [2], [1], [1], [0, 0, 0, 1, 1, 1], [0], [0]>} : vector<2x8x16xbf16>, vector<2x8x16xbf16>, vector<2x8x8xf32> -> vector<2x8x8xf32>
    "tpu.trace_stop"() : () -> ()
    %cst_24 = arith.constant 2.500000e-01 : f32
    %77 = vector.broadcast %cst_24 : f32 to vector<2x8x8xf32>
    %78 = arith.mulf %76, %77 : vector<2x8x8xf32>
    %cst_25 = arith.constant 0xFF800000 : f32
    %79 = vector.shape_cast %38 : vector<1x8x8xi1> to vector<1x8x8xi1>
    %80 = vector.broadcast %79 : vector<1x8x8xi1> to vector<2x8x8xi1>
    %81 = vector.broadcast %cst_25 : f32 to vector<2x8x8xf32>
    %82 = arith.select %80, %78, %81 : vector<2x8x8xi1>, vector<2x8x8xf32>
    %cst_26 = arith.constant dense<0xFF800000> : vector<2x8xf32>
    %83 = vector.multi_reduction <maximumf>, %82, %cst_26 [2] : vector<2x8x8xf32> to vector<2x8xf32>
    %84 = vector.shape_cast %83 : vector<2x8xf32> to vector<2x8x1xf32>
    %85 = vector.broadcast %84 : vector<2x8x1xf32> to vector<2x8x8xf32>
    %86 = arith.subf %82, %85 : vector<2x8x8xf32>
    %87 = math.exp %86 : vector<2x8x8xf32>
    %cst_27 = arith.constant dense<0.000000e+00> : vector<2x8xf32>
    %88 = vector.multi_reduction <add>, %87, %cst_27 [2] : vector<2x8x8xf32> to vector<2x8xf32>
    %89 = vector.shape_cast %88 : vector<2x8xf32> to vector<2x8x1xf32>
    %90 = tpu.reciprocal %89 {approx = true} : vector<2x8x1xf32> -> vector<2x8x1xf32>
    %91 = vector.broadcast %90 : vector<2x8x1xf32> to vector<2x8x8xf32>
    %92 = arith.mulf %87, %91 : vector<2x8x8xf32>
    %93 = arith.truncf %92 : vector<2x8x8xf32> to vector<2x8x8xbf16>
    "tpu.trace_start"() <{level = 10 : i32, message = "bts,bsd->btd"}> : () -> ()
    %cst_28 = arith.constant dense<0.000000e+00> : vector<2x8x16xf32>
    %94 = tpu.matmul %93, %75, %cst_28 {dimension_numbers = #tpu.dot_dimension_numbers<[2], [1], [1], [2], [0, 0, 0, 1, 1, 2], [0], [0]>} : vector<2x8x8xbf16>, vector<2x8x16xbf16>, vector<2x8x16xf32> -> vector<2x8x16xf32>
    "tpu.trace_stop"() : () -> ()
    %95 = vector.shape_cast %94 : vector<2x8x16xf32> to vector<16x16xf32>
    %96 = arith.truncf %95 : vector<16x16xf32> to vector<16x16xbf16>
    %c16 = arith.constant 16 : index
    %c0_29 = arith.constant 0 : index
    %97 = vector.load %arg3[%c16, %c0_29] : memref<64x64xbf16, #tpu.memory_space<vmem>>, vector<16x64xbf16>
    %cst_30 = arith.constant dense<0.000000e+00> : vector<16x64xf32>
    %98 = tpu.matmul %96, %97, %cst_30 {dimension_numbers = #tpu.dot_dimension_numbers<[1], [0], [0], [1], [0, 0, 1, 1], [], []>} : vector<16x16xbf16>, vector<16x64xbf16>, vector<16x64xf32> -> vector<16x64xf32>
    %99 = arith.addf %69, %98 : vector<16x64xf32>
    %100 = vector.extract_strided_slice %30 {offsets = [0, 0, 32], sizes = [2, 8, 16], strides = [1, 1, 1]} : vector<2x8x64xf32> to vector<2x8x16xf32>
    %101 = arith.truncf %100 : vector<2x8x16xf32> to vector<2x8x16xbf16>
    %102 = vector.extract_strided_slice %32 {offsets = [0, 0, 32], sizes = [2, 8, 16], strides = [1, 1, 1]} : vector<2x8x64xf32> to vector<2x8x16xf32>
    %103 = arith.truncf %102 : vector<2x8x16xf32> to vector<2x8x16xbf16>
    %104 = vector.extract_strided_slice %34 {offsets = [0, 0, 32], sizes = [2, 8, 16], strides = [1, 1, 1]} : vector<2x8x64xf32> to vector<2x8x16xf32>
    %105 = arith.truncf %104 : vector<2x8x16xf32> to vector<2x8x16xbf16>
    "tpu.trace_start"() <{level = 10 : i32, message = "btd,bsd->bts"}> : () -> ()
    %cst_31 = arith.constant dense<0.000000e+00> : vector<2x8x8xf32>
    %106 = tpu.matmul %101, %103, %cst_31 {dimension_numbers = #tpu.dot_dimension_numbers<[2], [2], [1], [1], [0, 0, 0, 1, 1, 1], [0], [0]>} : vector<2x8x16xbf16>, vector<2x8x16xbf16>, vector<2x8x8xf32> -> vector<2x8x8xf32>
    "tpu.trace_stop"() : () -> ()
    %cst_32 = arith.constant 2.500000e-01 : f32
    %107 = vector.broadcast %cst_32 : f32 to vector<2x8x8xf32>
    %108 = arith.mulf %106, %107 : vector<2x8x8xf32>
    %cst_33 = arith.constant 0xFF800000 : f32
    %109 = vector.shape_cast %38 : vector<1x8x8xi1> to vector<1x8x8xi1>
    %110 = vector.broadcast %109 : vector<1x8x8xi1> to vector<2x8x8xi1>
    %111 = vector.broadcast %cst_33 : f32 to vector<2x8x8xf32>
    %112 = arith.select %110, %108, %111 : vector<2x8x8xi1>, vector<2x8x8xf32>
    %cst_34 = arith.constant dense<0xFF800000> : vector<2x8xf32>
    %113 = vector.multi_reduction <maximumf>, %112, %cst_34 [2] : vector<2x8x8xf32> to vector<2x8xf32>
    %114 = vector.shape_cast %113 : vector<2x8xf32> to vector<2x8x1xf32>
    %115 = vector.broadcast %114 : vector<2x8x1xf32> to vector<2x8x8xf32>
    %116 = arith.subf %112, %115 : vector<2x8x8xf32>
    %117 = math.exp %116 : vector<2x8x8xf32>
    %cst_35 = arith.constant dense<0.000000e+00> : vector<2x8xf32>
    %118 = vector.multi_reduction <add>, %117, %cst_35 [2] : vector<2x8x8xf32> to vector<2x8xf32>
    %119 = vector.shape_cast %118 : vector<2x8xf32> to vector<2x8x1xf32>
    %120 = tpu.reciprocal %119 {approx = true} : vector<2x8x1xf32> -> vector<2x8x1xf32>
    %121 = vector.broadcast %120 : vector<2x8x1xf32> to vector<2x8x8xf32>
    %122 = arith.mulf %117, %121 : vector<2x8x8xf32>
    %123 = arith.truncf %122 : vector<2x8x8xf32> to vector<2x8x8xbf16>
    "tpu.trace_start"() <{level = 10 : i32, message = "bts,bsd->btd"}> : () -> ()
    %cst_36 = arith.constant dense<0.000000e+00> : vector<2x8x16xf32>
    %124 = tpu.matmul %123, %105, %cst_36 {dimension_numbers = #tpu.dot_dimension_numbers<[2], [1], [1], [2], [0, 0, 0, 1, 1, 2], [0], [0]>} : vector<2x8x8xbf16>, vector<2x8x16xbf16>, vector<2x8x16xf32> -> vector<2x8x16xf32>
    "tpu.trace_stop"() : () -> ()
    %125 = vector.shape_cast %124 : vector<2x8x16xf32> to vector<16x16xf32>
    %126 = arith.truncf %125 : vector<16x16xf32> to vector<16x16xbf16>
    %c32 = arith.constant 32 : index
    %c0_37 = arith.constant 0 : index
    %127 = vector.load %arg3[%c32, %c0_37] : memref<64x64xbf16, #tpu.memory_space<vmem>>, vector<16x64xbf16>
    %cst_38 = arith.constant dense<0.000000e+00> : vector<16x64xf32>
    %128 = tpu.matmul %126, %127, %cst_38 {dimension_numbers = #tpu.dot_dimension_numbers<[1], [0], [0], [1], [0, 0, 1, 1], [], []>} : vector<16x16xbf16>, vector<16x64xbf16>, vector<16x64xf32> -> vector<16x64xf32>
    %129 = arith.addf %99, %128 : vector<16x64xf32>
    %130 = vector.extract_strided_slice %30 {offsets = [0, 0, 48], sizes = [2, 8, 16], strides = [1, 1, 1]} : vector<2x8x64xf32> to vector<2x8x16xf32>
    %131 = arith.truncf %130 : vector<2x8x16xf32> to vector<2x8x16xbf16>
    %132 = vector.extract_strided_slice %32 {offsets = [0, 0, 48], sizes = [2, 8, 16], strides = [1, 1, 1]} : vector<2x8x64xf32> to vector<2x8x16xf32>
    %133 = arith.truncf %132 : vector<2x8x16xf32> to vector<2x8x16xbf16>
    %134 = vector.extract_strided_slice %34 {offsets = [0, 0, 48], sizes = [2, 8, 16], strides = [1, 1, 1]} : vector<2x8x64xf32> to vector<2x8x16xf32>
    %135 = arith.truncf %134 : vector<2x8x16xf32> to vector<2x8x16xbf16>
    "tpu.trace_start"() <{level = 10 : i32, message = "btd,bsd->bts"}> : () -> ()
    %cst_39 = arith.constant dense<0.000000e+00> : vector<2x8x8xf32>
    %136 = tpu.matmul %131, %133, %cst_39 {dimension_numbers = #tpu.dot_dimension_numbers<[2], [2], [1], [1], [0, 0, 0, 1, 1, 1], [0], [0]>} : vector<2x8x16xbf16>, vector<2x8x16xbf16>, vector<2x8x8xf32> -> vector<2x8x8xf32>
    "tpu.trace_stop"() : () -> ()
    %cst_40 = arith.constant 2.500000e-01 : f32
    %137 = vector.broadcast %cst_40 : f32 to vector<2x8x8xf32>
    %138 = arith.mulf %136, %137 : vector<2x8x8xf32>
    %cst_41 = arith.constant 0xFF800000 : f32
    %139 = vector.shape_cast %38 : vector<1x8x8xi1> to vector<1x8x8xi1>
    %140 = vector.broadcast %139 : vector<1x8x8xi1> to vector<2x8x8xi1>
    %141 = vector.broadcast %cst_41 : f32 to vector<2x8x8xf32>
    %142 = arith.select %140, %138, %141 : vector<2x8x8xi1>, vector<2x8x8xf32>
    %cst_42 = arith.constant dense<0xFF800000> : vector<2x8xf32>
    %143 = vector.multi_reduction <maximumf>, %142, %cst_42 [2] : vector<2x8x8xf32> to vector<2x8xf32>
    %144 = vector.shape_cast %143 : vector<2x8xf32> to vector<2x8x1xf32>
    %145 = vector.broadcast %144 : vector<2x8x1xf32> to vector<2x8x8xf32>
    %146 = arith.subf %142, %145 : vector<2x8x8xf32>
    %147 = math.exp %146 : vector<2x8x8xf32>
    %cst_43 = arith.constant dense<0.000000e+00> : vector<2x8xf32>
    %148 = vector.multi_reduction <add>, %147, %cst_43 [2] : vector<2x8x8xf32> to vector<2x8xf32>
    %149 = vector.shape_cast %148 : vector<2x8xf32> to vector<2x8x1xf32>
    %150 = tpu.reciprocal %149 {approx = true} : vector<2x8x1xf32> -> vector<2x8x1xf32>
    %151 = vector.broadcast %150 : vector<2x8x1xf32> to vector<2x8x8xf32>
    %152 = arith.mulf %147, %151 : vector<2x8x8xf32>
    %153 = arith.truncf %152 : vector<2x8x8xf32> to vector<2x8x8xbf16>
    "tpu.trace_start"() <{level = 10 : i32, message = "bts,bsd->btd"}> : () -> ()
    %cst_44 = arith.constant dense<0.000000e+00> : vector<2x8x16xf32>
    %154 = tpu.matmul %153, %135, %cst_44 {dimension_numbers = #tpu.dot_dimension_numbers<[2], [1], [1], [2], [0, 0, 0, 1, 1, 2], [0], [0]>} : vector<2x8x8xbf16>, vector<2x8x16xbf16>, vector<2x8x16xf32> -> vector<2x8x16xf32>
    "tpu.trace_stop"() : () -> ()
    %155 = vector.shape_cast %154 : vector<2x8x16xf32> to vector<16x16xf32>
    %156 = arith.truncf %155 : vector<16x16xf32> to vector<16x16xbf16>
    %c48 = arith.constant 48 : index
    %c0_45 = arith.constant 0 : index
    %157 = vector.load %arg3[%c48, %c0_45] : memref<64x64xbf16, #tpu.memory_space<vmem>>, vector<16x64xbf16>
    %cst_46 = arith.constant dense<0.000000e+00> : vector<16x64xf32>
    %158 = tpu.matmul %156, %157, %cst_46 {dimension_numbers = #tpu.dot_dimension_numbers<[1], [0], [0], [1], [0, 0, 1, 1], [], []>} : vector<16x16xbf16>, vector<16x64xbf16>, vector<16x64xf32> -> vector<16x64xf32>
    %159 = arith.addf %129, %158 : vector<16x64xf32>
    %c0_47 = arith.constant 0 : index
    %c0_48 = arith.constant 0 : index
    %160 = vector.load %arg4[%c0_47, %c0_48] : memref<1x64xf32, #tpu.memory_space<vmem>>, vector<1x64xf32>
    %161 = vector.broadcast %160 : vector<1x64xf32> to vector<16x64xf32>
    %162 = arith.addf %159, %161 : vector<16x64xf32>
    %163 = arith.addf %1, %162 : vector<16x64xf32>
    %c0_49 = arith.constant 0 : index
    %c0_50 = arith.constant 0 : index
    %164 = vector.load %arg11[%c0_49, %c0_50] : memref<1x64xf32, #tpu.memory_space<vmem>>, vector<1x64xf32>
    %c0_51 = arith.constant 0 : index
    %c0_52 = arith.constant 0 : index
    %165 = vector.load %arg12[%c0_51, %c0_52] : memref<1x64xf32, #tpu.memory_space<vmem>>, vector<1x64xf32>
    %cst_53 = arith.constant dense<0.000000e+00> : vector<16xf32>
    %166 = vector.multi_reduction <add>, %163, %cst_53 [1] : vector<16x64xf32> to vector<16xf32>
    %167 = vector.shape_cast %166 : vector<16xf32> to vector<16x1xf32>
    %cst_54 = arith.constant 6.400000e+01 : f32
    %168 = vector.broadcast %cst_54 : f32 to vector<16x1xf32>
    %169 = arith.divf %167, %168 : vector<16x1xf32>
    %170 = vector.broadcast %169 : vector<16x1xf32> to vector<16x64xf32>
    %171 = arith.subf %163, %170 : vector<16x64xf32>
    %172 = arith.mulf %171, %171 : vector<16x64xf32>
    %cst_55 = arith.constant dense<0.000000e+00> : vector<16xf32>
    %173 = vector.multi_reduction <add>, %172, %cst_55 [1] : vector<16x64xf32> to vector<16xf32>
    %174 = vector.shape_cast %173 : vector<16xf32> to vector<16x1xf32>
    %cst_56 = arith.constant 6.400000e+01 : f32
    %175 = vector.broadcast %cst_56 : f32 to vector<16x1xf32>
    %176 = arith.divf %174, %175 : vector<16x1xf32>
    %cst_57 = arith.constant 9.99999974E-6 : f32
    %177 = vector.broadcast %cst_57 : f32 to vector<16x1xf32>
    %178 = arith.addf %176, %177 : vector<16x1xf32>
    %179 = math.rsqrt %178 : vector<16x1xf32>
    %180 = vector.broadcast %169 : vector<16x1xf32> to vector<16x64xf32>
    %181 = arith.subf %163, %180 : vector<16x64xf32>
    %182 = vector.broadcast %179 : vector<16x1xf32> to vector<16x64xf32>
    %183 = arith.mulf %181, %182 : vector<16x64xf32>
    %184 = vector.broadcast %164 : vector<1x64xf32> to vector<16x64xf32>
    %185 = arith.mulf %183, %184 : vector<16x64xf32>
    %186 = vector.broadcast %165 : vector<1x64xf32> to vector<16x64xf32>
    %187 = arith.addf %185, %186 : vector<16x64xf32>
    %188 = arith.truncf %187 : vector<16x64xf32> to vector<16x64xbf16>
    %c0_58 = arith.constant 0 : index
    %c0_59 = arith.constant 0 : index
    %189 = vector.load %arg5[%c0_58, %c0_59] : memref<64x256xbf16, #tpu.memory_space<vmem>>, vector<64x256xbf16>
    %cst_60 = arith.constant dense<0.000000e+00> : vector<16x256xf32>
    %190 = tpu.matmul %188, %189, %cst_60 {dimension_numbers = #tpu.dot_dimension_numbers<[1], [0], [0], [1], [0, 0, 1, 1], [], []>} : vector<16x64xbf16>, vector<64x256xbf16>, vector<16x256xf32> -> vector<16x256xf32>
    %c0_61 = arith.constant 0 : index
    %c0_62 = arith.constant 0 : index
    %191 = vector.load %arg6[%c0_61, %c0_62] : memref<1x256xf32, #tpu.memory_space<vmem>>, vector<1x256xf32>
    %192 = vector.broadcast %191 : vector<1x256xf32> to vector<16x256xf32>
    %193 = arith.addf %190, %192 : vector<16x256xf32>
    %cst_63 = arith.constant 0.000000e+00 : f32
    %194 = vector.broadcast %cst_63 : f32 to vector<16x256xf32>
    %195 = arith.maximumf %193, %194 : vector<16x256xf32>
    %196 = arith.truncf %195 : vector<16x256xf32> to vector<16x256xbf16>
    %c0_64 = arith.constant 0 : index
    %c0_65 = arith.constant 0 : index
    %197 = vector.load %arg7[%c0_64, %c0_65] : memref<256x64xbf16, #tpu.memory_space<vmem>>, vector<256x64xbf16>
    %cst_66 = arith.constant dense<0.000000e+00> : vector<16x64xf32>
    %198 = tpu.matmul %196, %197, %cst_66 {dimension_numbers = #tpu.dot_dimension_numbers<[1], [0], [0], [1], [0, 0, 1, 1], [], []>} : vector<16x256xbf16>, vector<256x64xbf16>, vector<16x64xf32> -> vector<16x64xf32>
    %c0_67 = arith.constant 0 : index
    %c0_68 = arith.constant 0 : index
    %199 = vector.load %arg8[%c0_67, %c0_68] : memref<1x64xf32, #tpu.memory_space<vmem>>, vector<1x64xf32>
    %200 = vector.broadcast %199 : vector<1x64xf32> to vector<16x64xf32>
    %201 = arith.addf %198, %200 : vector<16x64xf32>
    %202 = arith.addf %163, %201 : vector<16x64xf32>
    %203 = vector.shape_cast %202 : vector<16x64xf32> to vector<2x8x64xf32>
    %c0_69 = arith.constant 0 : index
    %c0_70 = arith.constant 0 : index
    %c0_71 = arith.constant 0 : index
    %204 = vector.load %arg13[%c0_69, %c0_70, %c0_71] : memref<2x8x64xf32, #tpu.memory_space<vmem>>, vector<2x8x64xf32>
    tpu.vector_store %arg13[%c0_69, %c0_70, %c0_71], %203 {strides = array<i32>} : memref<2x8x64xf32, #tpu.memory_space<vmem>>, vector<2x8x64xf32>,
    return
  }
  func.func @transform_0(%arg0: i32) -> (i32, i32, i32) {
    %c0_i32 = arith.constant 0 : i32
    %c0_i32_0 = arith.constant 0 : i32
    %c0_i32_1 = arith.constant 0 : i32
    return %arg0, %c0_i32, %c0_i32_0 : i32, i32, i32
  }
  func.func @transform_1(%arg0: i32) -> (i32, i32) {
    %c0_i32 = arith.constant 0 : i32
    %c0_i32_0 = arith.constant 0 : i32
    %c0_i32_1 = arith.constant 0 : i32
    return %c0_i32, %c0_i32_0 : i32, i32
  }
  func.func @transform_2(%arg0: i32) -> (i32, i32) {
    %c0_i32 = arith.constant 0 : i32
    %c0_i32_0 = arith.constant 0 : i32
    %c0_i32_1 = arith.constant 0 : i32
    return %c0_i32, %c0_i32_0 : i32, i32
  }
  func.func @transform_3(%arg0: i32) -> (i32, i32) {
    %c0_i32 = arith.constant 0 : i32
    %c0_i32_0 = arith.constant 0 : i32
    %c0_i32_1 = arith.constant 0 : i32
    return %c0_i32, %c0_i32_0 : i32, i32
  }
  func.func @transform_4(%arg0: i32) -> (i32, i32) {
    %c0_i32 = arith.constant 0 : i32
    %c0_i32_0 = arith.constant 0 : i32
    %c0_i32_1 = arith.constant 0 : i32
    return %c0_i32, %c0_i32_0 : i32, i32
  }
  func.func @transform_5(%arg0: i32) -> (i32, i32) {
    %c0_i32 = arith.constant 0 : i32
    %c0_i32_0 = arith.constant 0 : i32
    %c0_i32_1 = arith.constant 0 : i32
    return %c0_i32, %c0_i32_0 : i32, i32
  }
  func.func @transform_6(%arg0: i32) -> (i32, i32) {
    %c0_i32 = arith.constant 0 : i32
    %c0_i32_0 = arith.constant 0 : i32
    %c0_i32_1 = arith.constant 0 : i32
    return %c0_i32, %c0_i32_0 : i32, i32
  }
  func.func @transform_7(%arg0: i32) -> (i32, i32) {
    %c0_i32 = arith.constant 0 : i32
    %c0_i32_0 = arith.constant 0 : i32
    %c0_i32_1 = arith.constant 0 : i32
    return %c0_i32, %c0_i32_0 : i32, i32
  }
  func.func @transform_8(%arg0: i32) -> (i32, i32) {
    %c0_i32 = arith.constant 0 : i32
    %c0_i32_0 = arith.constant 0 : i32
    %c0_i32_1 = arith.constant 0 : i32
    return %c0_i32, %c0_i32_0 : i32, i32
  }
  func.func @transform_9(%arg0: i32) -> (i32, i32) {
    %c0_i32 = arith.constant 0 : i32
    %c0_i32_0 = arith.constant 0 : i32
    %c0_i32_1 = arith.constant 0 : i32
    return %c0_i32, %c0_i32_0 : i32, i32
  }
  func.func @transform_10(%arg0: i32) -> (i32, i32) {
    %c0_i32 = arith.constant 0 : i32
    %c0_i32_0 = arith.constant 0 : i32
    %c0_i32_1 = arith.constant 0 : i32
    return %c0_i32, %c0_i32_0 : i32, i32
  }
  func.func @transform_11(%arg0: i32) -> (i32, i32) {
    %c0_i32 = arith.constant 0 : i32
    %c0_i32_0 = arith.constant 0 : i32
    %c0_i32_1 = arith.constant 0 : i32
    return %c0_i32, %c0_i32_0 : i32, i32
  }
  func.func @transform_12(%arg0: i32) -> (i32, i32, i32) {
    %c0_i32 = arith.constant 0 : i32
    %c0_i32_0 = arith.constant 0 : i32
    %c0_i32_1 = arith.constant 0 : i32
    return %arg0, %c0_i32, %c0_i32_0 : i32, i32, i32
  }
}

</mosaic_0001>

<llo_original>
// kernel: tpu_custom_call.1
$region0: #{tpu_custom_call.1}
  #allocation0 [shape = 'u32[]', space=smem, size = 0x4, offset = 0x4, fixed_abs, tag = 'smem constant byte address 0x4 - core index']
  #allocation1 [shape = 'u32[144,128]{1,0:T(1,128)}', space=vmem, size = 0x12000, scoped, tag = 'internal scratch']
  %s0 = inlined_call_operand.vmem [shape: f32[2,8,64], index: 0, kind: input, shape index: {}]
  %s1 = inlined_call_operand.vmem [shape: bf16[64,192], index: 1, kind: input, shape index: {}]
  %s2 = inlined_call_operand.vmem [shape: bf16[64,64], index: 2, kind: input, shape index: {}]
  %s3 = inlined_call_operand.vmem [shape: f32[1,64], index: 3, kind: input, shape index: {}]
  %s4 = inlined_call_operand.vmem [shape: bf16[64,256], index: 4, kind: input, shape index: {}]
  %s5 = inlined_call_operand.vmem [shape: f32[1,256], index: 5, kind: input, shape index: {}]
  %s6 = inlined_call_operand.vmem [shape: bf16[256,64], index: 6, kind: input, shape index: {}]
  %s7 = inlined_call_operand.vmem [shape: f32[1,64], index: 7, kind: input, shape index: {}]
  %s8 = inlined_call_operand.vmem [shape: f32[1,64], index: 8, kind: input, shape index: {}]
  %s9 = inlined_call_operand.vmem [shape: f32[1,64], index: 9, kind: input, shape index: {}]
  %s10 = inlined_call_operand.vmem [shape: f32[1,64], index: 10, kind: input, shape index: {}]
  %s11 = inlined_call_operand.vmem [shape: f32[1,64], index: 11, kind: input, shape index: {}]
  %s12 = inlined_call_operand.hbm [shape: f32[2,8,64], index: 12, kind: output, shape index: {}]
  %s13 = sld [smem:[#allocation0]]
  $region58: #{tpu_custom_call.1} parent=0
    _
  %s15 = ssub.s32 1, %s13
  %s16 = scalar_select 0, %s15, %s13
  $region1: #{tpu_custom_call.1} parent=0
    #allocation2 [shape = 'u8[8192]{0}', space=vmem, size = 0x2000, scoped, tag = 'output window, operand 0, single buffered']
    #allocation3 [shape = 's32[1]{0}', space=sflag, size = 0x4, scoped, tag = 'scoped memory for tpu_custom_call.1']
    %17 = vsyncpa [#allocation3], 0
    // Predicated region
    $region2: #{tpu_custom_call.1} parent=1 // pred_check
      _
    $region3: #{tpu_custom_call.1} parent=1 // pred_check_branch
      %19 = sbr.rel (0) target = $region5
    $region4: #{tpu_custom_call.1} parent=1 // pred_region
      _
    $region5: #{tpu_custom_call.1} parent=1 // pred_fallthru
      _
    // Predicated region
    $region6: #{tpu_custom_call.1} parent=1 // pred_check
      _
    $region7: #{tpu_custom_call.1} parent=1 // pred_check_branch
      %21 = sbr.rel (0) target = $region9
    $region8: #{tpu_custom_call.1} parent=1 // pred_region
      _
    $region9: #{tpu_custom_call.1} parent=1 // pred_fallthru
      _
    // Predicated region
    $region10: #{tpu_custom_call.1} parent=1 // pred_check
      _
    $region11: #{tpu_custom_call.1} parent=1 // pred_check_branch
      %23 = sbr.rel (0) target = $region13
    $region12: #{tpu_custom_call.1} parent=1 // pred_region
      _
    $region13: #{tpu_custom_call.1} parent=1 // pred_fallthru
      _
    // Predicated region
    $region14: #{tpu_custom_call.1} parent=1 // pred_check
      _
    $region15: #{tpu_custom_call.1} parent=1 // pred_check_branch
      %25 = sbr.rel (0) target = $region17
    $region16: #{tpu_custom_call.1} parent=1 // pred_region
      _
    $region17: #{tpu_custom_call.1} parent=1 // pred_fallthru
      _
    // Predicated region
    $region18: #{tpu_custom_call.1} parent=1 // pred_check
      _
    $region19: #{tpu_custom_call.1} parent=1 // pred_check_branch
      %27 = sbr.rel (0) target = $region21
    $region20: #{tpu_custom_call.1} parent=1 // pred_region
      _
    $region21: #{tpu_custom_call.1} parent=1 // pred_fallthru
      _
    // Predicated region
    $region22: #{tpu_custom_call.1} parent=1 // pred_check
      _
    $region23: #{tpu_custom_call.1} parent=1 // pred_check_branch
      %29 = sbr.rel (0) target = $region25
    $region24: #{tpu_custom_call.1} parent=1 // pred_region
      _
    $region25: #{tpu_custom_call.1} parent=1 // pred_fallthru
      _
    // Predicated region
    $region26: #{tpu_custom_call.1} parent=1 // pred_check
      _
    $region27: #{tpu_custom_call.1} parent=1 // pred_check_branch
      %31 = sbr.rel (0) target = $region29
    $region28: #{tpu_custom_call.1} parent=1 // pred_region
      _
    $region29: #{tpu_custom_call.1} parent=1 // pred_fallthru
      _
    // Predicated region
    $region30: #{tpu_custom_call.1} parent=1 // pred_check
      _
    $region31: #{tpu_custom_call.1} parent=1 // pred_check_branch
      %33 = sbr.rel (0) target = $region33
    $region32: #{tpu_custom_call.1} parent=1 // pred_region
      _
    $region33: #{tpu_custom_call.1} parent=1 // pred_fallthru
      _
    // Predicated region
    $region34: #{tpu_custom_call.1} parent=1 // pred_check
      _
    $region35: #{tpu_custom_call.1} parent=1 // pred_check_branch
      %35 = sbr.rel (0) target = $region37
    $region36: #{tpu_custom_call.1} parent=1 // pred_region
      _
    $region37: #{tpu_custom_call.1} parent=1 // pred_fallthru
      _
    // Predicated region
    $region38: #{tpu_custom_call.1} parent=1 // pred_check
      _
    $region39: #{tpu_custom_call.1} parent=1 // pred_check_branch
      %37 = sbr.rel (0) target = $region41
    $region40: #{tpu_custom_call.1} parent=1 // pred_region
      _
    $region41: #{tpu_custom_call.1} parent=1 // pred_fallthru
      _
    // Predicated region
    $region42: #{tpu_custom_call.1} parent=1 // pred_check
      _
    $region43: #{tpu_custom_call.1} parent=1 // pred_check_branch
      %39 = sbr.rel (0) target = $region45
    $region44: #{tpu_custom_call.1} parent=1 // pred_region
      _
    $region45: #{tpu_custom_call.1} parent=1 // pred_fallthru
      _
    // Predicated region
    $region46: #{tpu_custom_call.1} parent=1 // pred_check
      _
    $region47: #{tpu_custom_call.1} parent=1 // pred_check_branch
      %41 = sbr.rel (0) target = $region49
    $region48: #{tpu_custom_call.1} parent=1 // pred_region
      _
    $region49: #{tpu_custom_call.1} parent=1 // pred_fallthru
      _
    %v43 = vld [vmem:[%s0] sm:$0xff]
    %v44 = vld [vmem:[%s0 + $0x8] sm:$0xff]
    %v45 = vld [vmem:[%s8] sm:$0x1]
    %v46 = vld [vmem:[%s9] sm:$0x1]
    %vm47 = vcmask 523264
    %v48 = vsel %vm47, %v43, 0.0
    %49 = vadd.xlane.f32.xlu0 %v48
    %v50 = vpop.xlane.xlu0 %49
    %v51 = vsel %vm47, %v44, 0.0
    %52 = vadd.xlane.f32.xlu0 %v51
    %v53 = vpop.xlane.xlu0 %52
    %v54 = vrcp.pop 64.0
    %v55 = vmul.f32 %v50, %v54
    %v56 = vmul.f32 %v53, %v54
    %v57 = vsub.f32 %v43, %v55
    %v58 = vsub.f32 %v44, %v56
    %v59 = vmul.f32 %v57, %v57
    %v60 = vmul.f32 %v58, %v58
    %v61 = vsel %vm47, %v59, 0.0
    %62 = vadd.xlane.f32.xlu0 %v61
    %v63 = vpop.xlane.xlu0 %62
    %v64 = vsel %vm47, %v60, 0.0
    %65 = vadd.xlane.f32.xlu0 %v64
    %v66 = vpop.xlane.xlu0 %65
    %v67 = vmul.f32 %v63, %v54
    %v68 = vmul.f32 %v66, %v54
    %v69 = vadd.f32 %v67, 1e-05
    %v70 = vadd.f32 %v68, 1e-05
    %v71 = vrsqrt.pop %v69
    %v72 = vrsqrt.pop %v70
    %v73 = vmul.f32 %v57, %v71
    %v74 = vmul.f32 %v58, %v72
    %v76 = vlaneseq
    %v77 = vshrl.u32 %v76, 7
    %v78 = vsub.s32 0, %v77
    %v79 = vrot.slane %v45, %v78
    %v81 = vmul.f32 %v73, %v79
    %v82 = vmul.f32 %v74, %v79
    %v84 = vlaneseq
    %v85 = vshrl.u32 %v84, 7
    %v86 = vsub.s32 0, %v85
    %v87 = vrot.slane %v46, %v86
    %v89 = vadd.f32 %v81, %v87
    %v90 = vadd.f32 %v82, %v87
    %v91 = vpack.c.bf16 %v90, %v89
    %v92 = vld [vmem:[%s1] sm:$0xff]
    %v93 = vld [vmem:[%s1 + $0x8] sm:$0xff]
    %v94 = vld [vmem:[%s1 + $0x10] sm:$0xff]
    %v95 = vld [vmem:[%s1 + $0x18] sm:$0xff]
    %v96 = vld [vmem:[%s1 + $0x20] sm:$0xff]
    %v97 = vld [vmem:[%s1 + $0x28] sm:$0xff]
    %v98 = vld [vmem:[%s1 + $0x30] sm:$0xff]
    %v99 = vld [vmem:[%s1 + $0x38] sm:$0xff]
    %v108 = vunpack.c.l.b16 %v92
    %v109 = vunpack.c.h.b16 %v92
    %v110 = vunpack.c.l.b16 %v93
    %v111 = vunpack.c.h.b16 %v93
    %v112 = vunpack.c.l.b16 %v94
    %v113 = vunpack.c.h.b16 %v94
    %v114 = vunpack.c.l.b16 %v95
    %v115 = vunpack.c.h.b16 %v95
    %v116 = vunpack.c.l.b16 %v96
    %v117 = vunpack.c.h.b16 %v96
    %v118 = vunpack.c.l.b16 %v97
    %v119 = vunpack.c.h.b16 %v97
    %v120 = vunpack.c.l.b16 %v98
    %v121 = vunpack.c.h.b16 %v98
    %v122 = vunpack.c.l.b16 %v99
    %v123 = vunpack.c.h.b16 %v99
    %v124 = vpack.c.b16 %v110, %v108
    %v125 = vpack.c.b16 %v111, %v109
    %v126 = vpack.c.b16 %v114, %v112
    %v127 = vpack.c.b16 %v115, %v113
    %v128 = vpack.c.b16 %v118, %v116
    %v129 = vpack.c.b16 %v119, %v117
    %v130 = vpack.c.b16 %v122, %v120
    %v131 = vpack.c.b16 %v123, %v121
    %v141 = vsel %vm47, %v91, 0
    %143 = vmatprep.subr.bf16.mxu0 0
    %144 = vmatpush1.bf16.msra.mxu0 0
    %145 = vmatprep.subr.bf16.mxu0 0
    %146 = vmatpush1.bf16.msra.mxu0 0
    %147 = vmatprep.subr.bf16.mxu0 0
    %148 = vmatpush1.bf16.msra.mxu0 0
    %149 = vmatprep.subr.bf16.mxu0 0
    %150 = vmatpush1.bf16.msra.mxu0 0
    %151 = vmatprep.subr.bf16.mxu0 %v131
    %152 = vmatpush1.bf16.msra.mxu0 %v130
    %153 = vmatprep.subr.bf16.mxu0 %v129
    %154 = vmatpush1.bf16.msra.mxu0 %v128
    %155 = vmatprep.subr.bf16.mxu0 %v127
    %156 = vmatpush1.bf16.msra.mxu0 %v126
    %157 = vmatprep.subr.bf16.mxu0 %v125
    %158 = vmatpush1.bf16.msra.mxu0 %v124
    %159 = vmatprep.subr.bf16.mxu0 0
    %160 = vmatpush2.bf16.msra.mxu0 0
    %161 = vmatprep.subr.bf16.mxu0 0
    %162 = vmatpush2.bf16.msra.mxu0 0
    %163 = vmatprep.subr.bf16.mxu0 0
    %164 = vmatpush2.bf16.msra.mxu0 0
    %165 = vmatprep.subr.bf16.mxu0 0
    %166 = vmatpush2.bf16.msra.mxu0 0
    %167 = vmatprep.subr.bf16.mxu0 0
    %168 = vmatpush2.bf16.msra.mxu0 0
    %169 = vmatprep.subr.bf16.mxu0 0
    %170 = vmatpush2.bf16.msra.mxu0 0
    %171 = vmatprep.subr.bf16.mxu0 0
    %172 = vmatpush2.bf16.msra.mxu0 0
    %173 = vmatprep.subr.bf16.mxu0 0
    %174 = vmatpush2.bf16.msra.mxu0 0
    %175 = vmatprep.mubr.bf16.mxu0 0
    %176 = vmatmul.mubr.bf16.gmra.mxu0 %v141
    %v177 = vpop.f32.mrf.mxu0
    %v178 = vadd.f32 0.0, %v177
    %v179 = vpop.f32.mrf.mxu0
    %v180 = vadd.f32 0.0, %v179
    %v181 = vpop.f32.mrf.mxu0
    %v182 = vadd.f32 0.0, %v181
    %v183 = vpop.f32.mrf.mxu0
    %v184 = vadd.f32 0.0, %v183
    %185 = vdwg.mxu0
    %v186 = vlaneseq
    %v187 = vshrl.u32 %v186, 7
    %v188 = vlaneseq
    %v189 = vand.u32 %v188, 127
    %vm190 = vcmp.ge.s32.totalorder %v187, %v189
    %v191 = vpack.c.bf16 %v178, %v178
    %v192 = vpack.c.bf16 %v182, %v182
    %v193 = vpack.c.bf16 %v180, %v180
    %v194 = vpack.c.bf16 %v184, %v184
    %196 = vrot.lane.b32.xlu0 %v191, 64
    %v197 = vpop.permute.xlu0 %196
    %vm198 = vcmask 130048
    %v200 = vsel %vm198, %v191, 0
    %v203 = vsel %vm198, %v197, 0
    %205 = vmatprep.subr.bf16.mxu0 0
    %206 = vmatpush1.bf16.xpose.msra.mxu0 0
    %207 = vmatprep.subr.bf16.mxu0 0
    %208 = vmatpush1.bf16.xpose.msra.mxu0 0
    %209 = vmatprep.subr.bf16.mxu0 0
    %210 = vmatpush1.bf16.xpose.msra.mxu0 0
    %211 = vmatprep.subr.bf16.mxu0 0
    %212 = vmatpush1.bf16.xpose.msra.mxu0 0
    %213 = vmatprep.subr.bf16.mxu0 0
    %214 = vmatpush1.bf16.xpose.msra.mxu0 0
    %215 = vmatprep.subr.bf16.mxu0 0
    %216 = vmatpush1.bf16.xpose.msra.mxu0 0
    %217 = vmatprep.subr.bf16.mxu0 0
    %218 = vmatpush1.bf16.xpose.msra.mxu0 0
    %219 = vmatprep.subr.bf16.mxu0 0
    %220 = vmatpush1.bf16.xpose.msra.mxu0 %v203
    %221 = vmatprep.subr.bf16.mxu0 0
    %222 = vmatpush2.bf16.xpose.msra.mxu0 0
    %223 = vmatprep.subr.bf16.mxu0 0
    %224 = vmatpush2.bf16.xpose.msra.mxu0 0
    %225 = vmatprep.subr.bf16.mxu0 0
    %226 = vmatpush2.bf16.xpose.msra.mxu0 0
    %227 = vmatprep.subr.bf16.mxu0 0
    %228 = vmatpush2.bf16.xpose.msra.mxu0 0
    %229 = vmatprep.subr.bf16.mxu0 0
    %230 = vmatpush2.bf16.xpose.msra.mxu0 0
    %231 = vmatprep.subr.bf16.mxu0 0
    %232 = vmatpush2.bf16.xpose.msra.mxu0 0
    %233 = vmatprep.subr.bf16.mxu0 0
    %234 = vmatpush2.bf16.xpose.msra.mxu0 0
    %235 = vmatprep.subr.bf16.mxu0 0
    %236 = vmatpush2.bf16.xpose.msra.mxu0 0
    %237 = vmatprep.mubr.bf16.mxu0 0
    %238 = vmatmul.mubr.bf16.gmra.mxu0 %v200
    %v239 = vpop.f32.mrf.mxu0
    %v240 = vadd.f32 0.0, %v239
    %v241 = vpop.f32.mrf.mxu0
    %v242 = vpop.f32.mrf.mxu0
    %v243 = vpop.f32.mrf.mxu0
    %244 = vdwg.mxu0
    %246 = vrot.lane.b32.xlu0 %v192, 64
    %v247 = vpop.permute.xlu0 %246
    %v249 = vsel %vm198, %v192, 0
    %v252 = vsel %vm198, %v247, 0
    %254 = vmatprep.subr.bf16.mxu0 0
    %255 = vmatpush1.bf16.xpose.msra.mxu0 0
    %256 = vmatprep.subr.bf16.mxu0 0
    %257 = vmatpush1.bf16.xpose.msra.mxu0 0
    %258 = vmatprep.subr.bf16.mxu0 0
    %259 = vmatpush1.bf16.xpose.msra.mxu0 0
    %260 = vmatprep.subr.bf16.mxu0 0
    %261 = vmatpush1.bf16.xpose.msra.mxu0 0
    %262 = vmatprep.subr.bf16.mxu0 0
    %263 = vmatpush1.bf16.xpose.msra.mxu0 0
    %264 = vmatprep.subr.bf16.mxu0 0
    %265 = vmatpush1.bf16.xpose.msra.mxu0 0
    %266 = vmatprep.subr.bf16.mxu0 0
    %267 = vmatpush1.bf16.xpose.msra.mxu0 0
    %268 = vmatprep.subr.bf16.mxu0 0
    %269 = vmatpush1.bf16.xpose.msra.mxu0 %v252
    %270 = vmatprep.subr.bf16.mxu0 0
    %271 = vmatpush2.bf16.xpose.msra.mxu0 0
    %272 = vmatprep.subr.bf16.mxu0 0
    %273 = vmatpush2.bf16.xpose.msra.mxu0 0
    %274 = vmatprep.subr.bf16.mxu0 0
    %275 = vmatpush2.bf16.xpose.msra.mxu0 0
    %276 = vmatprep.subr.bf16.mxu0 0
    %277 = vmatpush2.bf16.xpose.msra.mxu0 0
    %278 = vmatprep.subr.bf16.mxu0 0
    %279 = vmatpush2.bf16.xpose.msra.mxu0 0
    %280 = vmatprep.subr.bf16.mxu0 0
    %281 = vmatpush2.bf16.xpose.msra.mxu0 0
    %282 = vmatprep.subr.bf16.mxu0 0
    %283 = vmatpush2.bf16.xpose.msra.mxu0 0
    %284 = vmatprep.subr.bf16.mxu0 0
    %285 = vmatpush2.bf16.xpose.msra.mxu0 0
    %286 = vmatprep.mubr.bf16.mxu0 0
    %287 = vmatmul.mubr.bf16.gmra.mxu0 %v249
    %v288 = vpop.f32.mrf.mxu0
    %v289 = vadd.f32 0.0, %v288
    %v290 = vpop.f32.mrf.mxu0
    %v291 = vpop.f32.mrf.mxu0
    %v292 = vpop.f32.mrf.mxu0
    %293 = vdwg.mxu0
    %v294 = vmul.f32 %v240, 0.25
    %v295 = vmul.f32 %v289, 0.25
    %v296 = vsel %vm190, 1, 0
    %vm297 = vcmp.eq.s32.totalorder %v296, 1
    %v298 = vsel %vm297, %v294, -inf
    %v299 = vsel %vm297, %v295, -inf
    %vm300 = vcmask 64512
    %v301 = vsel %vm300, %v298, -inf
    %302 = vmax.xlane.f32.xlu0 %v301
    %v303 = vpop.xlane.xlu0 %302
    %v304 = vsel %vm300, %v299, -inf
    %305 = vmax.xlane.f32.xlu0 %v304
    %v306 = vpop.xlane.xlu0 %305
    %v307 = vsub.f32 %v298, %v303
    %v308 = vsub.f32 %v299, %v306
    %v309 = vmul.f32 %v307, 1.442695
    %v310 = vpow.pop %v309
    %v311 = vmul.f32 %v308, 1.442695
    %v312 = vpow.pop %v311
    %v313 = vsel %vm300, %v310, 0.0
    %314 = vadd.xlane.f32.xlu0 %v313
    %v315 = vpop.xlane.xlu0 %314
    %v316 = vsel %vm300, %v312, 0.0
    %317 = vadd.xlane.f32.xlu0 %v316
    %v318 = vpop.xlane.xlu0 %317
    %v319 = vrcp.pop %v315
    %v320 = vrcp.pop %v318
    %v321 = vmul.f32 %v310, %v319
    %v322 = vmul.f32 %v312, %v320
    %v323 = vpack.c.bf16 %v321, %v321
    %v324 = vpack.c.bf16 %v322, %v322
    %v326 = vsel %vm300, %v323, 0
    %vm328 = vcmask 1043456
    %v330 = vsel %vm328, %v193, 0
    %332 = vmatprep.subr.bf16.mxu0 0
    %333 = vmatpush1.bf16.msra.mxu0 0
    %334 = vmatprep.subr.bf16.mxu0 0
    %335 = vmatpush1.bf16.msra.mxu0 0
    %336 = vmatprep.subr.bf16.mxu0 0
    %337 = vmatpush1.bf16.msra.mxu0 0
    %338 = vmatprep.subr.bf16.mxu0 0
    %339 = vmatpush1.bf16.msra.mxu0 0
    %340 = vmatprep.subr.bf16.mxu0 0
    %341 = vmatpush1.bf16.msra.mxu0 0
    %342 = vmatprep.subr.bf16.mxu0 0
    %343 = vmatpush1.bf16.msra.mxu0 0
    %344 = vmatprep.subr.bf16.mxu0 0
    %345 = vmatpush1.bf16.msra.mxu0 0
    %346 = vmatprep.subr.bf16.mxu0 0
    %347 = vmatpush1.bf16.msra.mxu0 %v330
    %348 = vmatprep.subr.bf16.mxu0 0
    %349 = vmatpush2.bf16.msra.mxu0 0
    %350 = vmatprep.subr.bf16.mxu0 0
    %351 = vmatpush2.bf16.msra.mxu0 0
    %352 = vmatprep.subr.bf16.mxu0 0
    %353 = vmatpush2.bf16.msra.mxu0 0
    %354 = vmatprep.subr.bf16.mxu0 0
    %355 = vmatpush2.bf16.msra.mxu0 0
    %356 = vmatprep.subr.bf16.mxu0 0
    %357 = vmatpush2.bf16.msra.mxu0 0
    %358 = vmatprep.subr.bf16.mxu0 0
    %359 = vmatpush2.bf16.msra.mxu0 0
    %360 = vmatprep.subr.bf16.mxu0 0
    %361 = vmatpush2.bf16.msra.mxu0 0
    %362 = vmatprep.subr.bf16.mxu0 0
    %363 = vmatpush2.bf16.msra.mxu0 0
    %364 = vmatprep.mubr.bf16.mxu0 0
    %365 = vmatmul.mubr.bf16.gmra.mxu0 %v326
    %v366 = vpop.f32.mrf.mxu0
    %v367 = vadd.f32 0.0, %v366
    %v368 = vpop.f32.mrf.mxu0
    %v369 = vpop.f32.mrf.mxu0
    %v370 = vpop.f32.mrf.mxu0
    %371 = vdwg.mxu0
    %v373 = vsel %vm300, %v324, 0
    %v376 = vsel %vm328, %v194, 0
    %378 = vmatprep.subr.bf16.mxu0 0
    %379 = vmatpush1.bf16.msra.mxu0 0
    %380 = vmatprep.subr.bf16.mxu0 0
    %381 = vmatpush1.bf16.msra.mxu0 0
    %382 = vmatprep.subr.bf16.mxu0 0
    %383 = vmatpush1.bf16.msra.mxu0 0
    %384 = vmatprep.subr.bf16.mxu0 0
    %385 = vmatpush1.bf16.msra.mxu0 0
    %386 = vmatprep.subr.bf16.mxu0 0
    %387 = vmatpush1.bf16.msra.mxu0 0
    %388 = vmatprep.subr.bf16.mxu0 0
    %389 = vmatpush1.bf16.msra.mxu0 0
    %390 = vmatprep.subr.bf16.mxu0 0
    %391 = vmatpush1.bf16.msra.mxu0 0
    %392 = vmatprep.subr.bf16.mxu0 0
    %393 = vmatpush1.bf16.msra.mxu0 %v376
    %394 = vmatprep.subr.bf16.mxu0 0
    %395 = vmatpush2.bf16.msra.mxu0 0
    %396 = vmatprep.subr.bf16.mxu0 0
    %397 = vmatpush2.bf16.msra.mxu0 0
    %398 = vmatprep.subr.bf16.mxu0 0
    %399 = vmatpush2.bf16.msra.mxu0 0
    %400 = vmatprep.subr.bf16.mxu0 0
    %401 = vmatpush2.bf16.msra.mxu0 0
    %402 = vmatprep.subr.bf16.mxu0 0
    %403 = vmatpush2.bf16.msra.mxu0 0
    %404 = vmatprep.subr.bf16.mxu0 0
    %405 = vmatpush2.bf16.msra.mxu0 0
    %406 = vmatprep.subr.bf16.mxu0 0
    %407 = vmatpush2.bf16.msra.mxu0 0
    %408 = vmatprep.subr.bf16.mxu0 0
    %409 = vmatpush2.bf16.msra.mxu0 0
    %410 = vmatprep.mubr.bf16.mxu0 0
    %411 = vmatmul.mubr.bf16.gmra.mxu0 %v373
    %v412 = vpop.f32.mrf.mxu0
    %v413 = vadd.f32 0.0, %v412
    %v414 = vpop.f32.mrf.mxu0
    %v415 = vpop.f32.mrf.mxu0
    %v416 = vpop.f32.mrf.mxu0
    %417 = vdwg.mxu0
    %v418 = vpack.c.bf16 %v413, %v367
    %v419 = vld [vmem:[%s2] sm:$0xf]
    %v420 = vld [vmem:[%s2 + $0x4] sm:$0xf]
    %421 = vrot.lane.b32.xlu0 %v191, 112
    %v422 = vpop.permute.xlu0 %421
    %423 = vrot.lane.b32.xlu0 %v191, 48
    %v424 = vpop.permute.xlu0 %423
    %v426 = vsel %vm198, %v422, 0
    %v429 = vsel %vm198, %v424, 0
    %431 = vmatprep.subr.bf16.mxu0 0
    %432 = vmatpush1.bf16.xpose.msra.mxu0 0
    %433 = vmatprep.subr.bf16.mxu0 0
    %434 = vmatpush1.bf16.xpose.msra.mxu0 0
    %435 = vmatprep.subr.bf16.mxu0 0
    %436 = vmatpush1.bf16.xpose.msra.mxu0 0
    %437 = vmatprep.subr.bf16.mxu0 0
    %438 = vmatpush1.bf16.xpose.msra.mxu0 0
    %439 = vmatprep.subr.bf16.mxu0 0
    %440 = vmatpush1.bf16.xpose.msra.mxu0 0
    %441 = vmatprep.subr.bf16.mxu0 0
    %442 = vmatpush1.bf16.xpose.msra.mxu0 0
    %443 = vmatprep.subr.bf16.mxu0 0
    %444 = vmatpush1.bf16.xpose.msra.mxu0 0
    %445 = vmatprep.subr.bf16.mxu0 0
    %446 = vmatpush1.bf16.xpose.msra.mxu0 %v429
    %447 = vmatprep.subr.bf16.mxu0 0
    %448 = vmatpush2.bf16.xpose.msra.mxu0 0
    %449 = vmatprep.subr.bf16.mxu0 0
    %450 = vmatpush2.bf16.xpose.msra.mxu0 0
    %451 = vmatprep.subr.bf16.mxu0 0
    %452 = vmatpush2.bf16.xpose.msra.mxu0 0
    %453 = vmatprep.subr.bf16.mxu0 0
    %454 = vmatpush2.bf16.xpose.msra.mxu0 0
    %455 = vmatprep.subr.bf16.mxu0 0
    %456 = vmatpush2.bf16.xpose.msra.mxu0 0
    %457 = vmatprep.subr.bf16.mxu0 0
    %458 = vmatpush2.bf16.xpose.msra.mxu0 0
    %459 = vmatprep.subr.bf16.mxu0 0
    %460 = vmatpush2.bf16.xpose.msra.mxu0 0
    %461 = vmatprep.subr.bf16.mxu0 0
    %462 = vmatpush2.bf16.xpose.msra.mxu0 0
    %463 = vmatprep.mubr.bf16.mxu0 0
    %464 = vmatmul.mubr.bf16.gmra.mxu0 %v426
    %v465 = vpop.f32.mrf.mxu0
    %v466 = vadd.f32 0.0, %v465
    %v467 = vpop.f32.mrf.mxu0
    %v468 = vpop.f32.mrf.mxu0
    %v469 = vpop.f32.mrf.mxu0
    %470 = vdwg.mxu0
    %471 = vrot.lane.b32.xlu0 %v192, 112
    %v472 = vpop.permute.xlu0 %471
    %473 = vrot.lane.b32.xlu0 %v192, 48
    %v474 = vpop.permute.xlu0 %473
    %v476 = vsel %vm198, %v472, 0
    %v479 = vsel %vm198, %v474, 0
    %481 = vmatprep.subr.bf16.mxu0 0
    %482 = vmatpush1.bf16.xpose.msra.mxu0 0
    %483 = vmatprep.subr.bf16.mxu0 0
    %484 = vmatpush1.bf16.xpose.msra.mxu0 0
    %485 = vmatprep.subr.bf16.mxu0 0
    %486 = vmatpush1.bf16.xpose.msra.mxu0 0
    %487 = vmatprep.subr.bf16.mxu0 0
    %488 = vmatpush1.bf16.xpose.msra.mxu0 0
    %489 = vmatprep.subr.bf16.mxu0 0
    %490 = vmatpush1.bf16.xpose.msra.mxu0 0
    %491 = vmatprep.subr.bf16.mxu0 0
    %492 = vmatpush1.bf16.xpose.msra.mxu0 0
    %493 = vmatprep.subr.bf16.mxu0 0
    %494 = vmatpush1.bf16.xpose.msra.mxu0 0
    %495 = vmatprep.subr.bf16.mxu0 0
    %496 = vmatpush1.bf16.xpose.msra.mxu0 %v479
    %497 = vmatprep.subr.bf16.mxu0 0
    %498 = vmatpush2.bf16.xpose.msra.mxu0 0
    %499 = vmatprep.subr.bf16.mxu0 0
    %500 = vmatpush2.bf16.xpose.msra.mxu0 0
    %501 = vmatprep.subr.bf16.mxu0 0
    %502 = vmatpush2.bf16.xpose.msra.mxu0 0
    %503 = vmatprep.subr.bf16.mxu0 0
    %504 = vmatpush2.bf16.xpose.msra.mxu0 0
    %505 = vmatprep.subr.bf16.mxu0 0
    %506 = vmatpush2.bf16.xpose.msra.mxu0 0
    %507 = vmatprep.subr.bf16.mxu0 0
    %508 = vmatpush2.bf16.xpose.msra.mxu0 0
    %509 = vmatprep.subr.bf16.mxu0 0
    %510 = vmatpush2.bf16.xpose.msra.mxu0 0
    %511 = vmatprep.subr.bf16.mxu0 0
    %512 = vmatpush2.bf16.xpose.msra.mxu0 0
    %513 = vmatprep.mubr.bf16.mxu0 0
    %514 = vmatmul.mubr.bf16.gmra.mxu0 %v476
    %v515 = vpop.f32.mrf.mxu0
    %v516 = vadd.f32 0.0, %v515
    %v517 = vpop.f32.mrf.mxu0
    %v518 = vpop.f32.mrf.mxu0
    %v519 = vpop.f32.mrf.mxu0
    %520 = vdwg.mxu0
    %v521 = vmul.f32 %v466, 0.25
    %v522 = vmul.f32 %v516, 0.25
    %v523 = vsel %vm297, %v521, -inf
    %v524 = vsel %vm297, %v522, -inf
    %v525 = vsel %vm300, %v523, -inf
    %526 = vmax.xlane.f32.xlu0 %v525
    %v527 = vpop.xlane.xlu0 %526
    %v528 = vsel %vm300, %v524, -inf
    %529 = vmax.xlane.f32.xlu0 %v528
    %v530 = vpop.xlane.xlu0 %529
    %v531 = vsub.f32 %v523, %v527
    %v532 = vsub.f32 %v524, %v530
    %v533 = vmul.f32 %v531, 1.442695
    %v534 = vpow.pop %v533
    %v535 = vmul.f32 %v532, 1.442695
    %v536 = vpow.pop %v535
    %v537 = vsel %vm300, %v534, 0.0
    %538 = vadd.xlane.f32.xlu0 %v537
    %v539 = vpop.xlane.xlu0 %538
    %v540 = vsel %vm300, %v536, 0.0
    %541 = vadd.xlane.f32.xlu0 %v540
    %v542 = vpop.xlane.xlu0 %541
    %v543 = vrcp.pop %v539
    %v544 = vrcp.pop %v542
    %v545 = vmul.f32 %v534, %v543
    %v546 = vmul.f32 %v536, %v544
    %v547 = vpack.c.bf16 %v545, %v545
    %v548 = vpack.c.bf16 %v546, %v546
    %550 = vrot.lane.b32.xlu0 %v193, 112
    %v551 = vpop.permute.xlu0 %550
    %v553 = vsel %vm300, %v547, 0
    %v556 = vsel %vm328, %v551, 0
    %558 = vmatprep.subr.bf16.mxu0 0
    %559 = vmatpush1.bf16.msra.mxu0 0
    %560 = vmatprep.subr.bf16.mxu0 0
    %561 = vmatpush1.bf16.msra.mxu0 0
    %562 = vmatprep.subr.bf16.mxu0 0
    %563 = vmatpush1.bf16.msra.mxu0 0
    %564 = vmatprep.subr.bf16.mxu0 0
    %565 = vmatpush1.bf16.msra.mxu0 0
    %566 = vmatprep.subr.bf16.mxu0 0
    %567 = vmatpush1.bf16.msra.mxu0 0
    %568 = vmatprep.subr.bf16.mxu0 0
    %569 = vmatpush1.bf16.msra.mxu0 0
    %570 = vmatprep.subr.bf16.mxu0 0
    %571 = vmatpush1.bf16.msra.mxu0 0
    %572 = vmatprep.subr.bf16.mxu0 0
    %573 = vmatpush1.bf16.msra.mxu0 %v556
    %574 = vmatprep.subr.bf16.mxu0 0
    %575 = vmatpush2.bf16.msra.mxu0 0
    %576 = vmatprep.subr.bf16.mxu0 0
    %577 = vmatpush2.bf16.msra.mxu0 0
    %578 = vmatprep.subr.bf16.mxu0 0
    %579 = vmatpush2.bf16.msra.mxu0 0
    %580 = vmatprep.subr.bf16.mxu0 0
    %581 = vmatpush2.bf16.msra.mxu0 0
    %582 = vmatprep.subr.bf16.mxu0 0
    %583 = vmatpush2.bf16.msra.mxu0 0
    %584 = vmatprep.subr.bf16.mxu0 0
    %585 = vmatpush2.bf16.msra.mxu0 0
    %586 = vmatprep.subr.bf16.mxu0 0
    %587 = vmatpush2.bf16.msra.mxu0 0
    %588 = vmatprep.subr.bf16.mxu0 0
    %589 = vmatpush2.bf16.msra.mxu0 0
    %590 = vmatprep.mubr.bf16.mxu0 0
    %591 = vmatmul.mubr.bf16.gmra.mxu0 %v553
    %v592 = vpop.f32.mrf.mxu0
    %v593 = vadd.f32 0.0, %v592
    %v594 = vpop.f32.mrf.mxu0
    %v595 = vpop.f32.mrf.mxu0
    %v596 = vpop.f32.mrf.mxu0
    %597 = vdwg.mxu0
    %599 = vrot.lane.b32.xlu0 %v194, 112
    %v600 = vpop.permute.xlu0 %599
    %v602 = vsel %vm300, %v548, 0
    %v605 = vsel %vm328, %v600, 0
    %607 = vmatprep.subr.bf16.mxu0 0
    %608 = vmatpush1.bf16.msra.mxu0 0
    %609 = vmatprep.subr.bf16.mxu0 0
    %610 = vmatpush1.bf16.msra.mxu0 0
    %611 = vmatprep.subr.bf16.mxu0 0
    %612 = vmatpush1.bf16.msra.mxu0 0
    %613 = vmatprep.subr.bf16.mxu0 0
    %614 = vmatpush1.bf16.msra.mxu0 0
    %615 = vmatprep.subr.bf16.mxu0 0
    %616 = vmatpush1.bf16.msra.mxu0 0
    %617 = vmatprep.subr.bf16.mxu0 0
    %618 = vmatpush1.bf16.msra.mxu0 0
    %619 = vmatprep.subr.bf16.mxu0 0
    %620 = vmatpush1.bf16.msra.mxu0 0
    %621 = vmatprep.subr.bf16.mxu0 0
    %622 = vmatpush1.bf16.msra.mxu0 %v605
    %623 = vmatprep.subr.bf16.mxu0 0
    %624 = vmatpush2.bf16.msra.mxu0 0
    %625 = vmatprep.subr.bf16.mxu0 0
    %626 = vmatpush2.bf16.msra.mxu0 0
    %627 = vmatprep.subr.bf16.mxu0 0
    %628 = vmatpush2.bf16.msra.mxu0 0
    %629 = vmatprep.subr.bf16.mxu0 0
    %630 = vmatpush2.bf16.msra.mxu0 0
    %631 = vmatprep.subr.bf16.mxu0 0
    %632 = vmatpush2.bf16.msra.mxu0 0
    %633 = vmatprep.subr.bf16.mxu0 0
    %634 = vmatpush2.bf16.msra.mxu0 0
    %635 = vmatprep.subr.bf16.mxu0 0
    %636 = vmatpush2.bf16.msra.mxu0 0
    %637 = vmatprep.subr.bf16.mxu0 0
    %638 = vmatpush2.bf16.msra.mxu0 0
    %639 = vmatprep.mubr.bf16.mxu0 0
    %640 = vmatmul.mubr.bf16.gmra.mxu0 %v602
    %v641 = vpop.f32.mrf.mxu0
    %v642 = vadd.f32 0.0, %v641
    %v643 = vpop.f32.mrf.mxu0
    %v644 = vpop.f32.mrf.mxu0
    %v645 = vpop.f32.mrf.mxu0
    %646 = vdwg.mxu0
    %v647 = vpack.c.bf16 %v642, %v593
    %v648 = vld [vmem:[%s2 + $0x8] sm:$0xf]
    %v649 = vld [vmem:[%s2 + $0xc] sm:$0xf]
    %v652 = vunpack.c.l.b16 %v648
    %v653 = vunpack.c.l.b16 %v649
    %v654 = vpack.c.b16 %v653, %v652
    %v657 = vsel %vm198, %v647, 0
    %659 = vmatprep.subr.bf16.mxu0 0
    %660 = vmatpush1.bf16.msra.mxu0 0
    %661 = vmatprep.subr.bf16.mxu0 0
    %662 = vmatpush1.bf16.msra.mxu0 0
    %663 = vmatprep.subr.bf16.mxu0 0
    %664 = vmatpush1.bf16.msra.mxu0 0
    %665 = vmatprep.subr.bf16.mxu0 0
    %666 = vmatpush1.bf16.msra.mxu0 0
    %667 = vmatprep.subr.bf16.mxu0 0
    %668 = vmatpush1.bf16.msra.mxu0 0
    %669 = vmatprep.subr.bf16.mxu0 0
    %670 = vmatpush1.bf16.msra.mxu0 0
    %671 = vmatprep.subr.bf16.mxu0 0
    %672 = vmatpush1.bf16.msra.mxu0 0
    %673 = vmatprep.subr.bf16.mxu0 0
    %674 = vmatpush1.bf16.msra.mxu0 %v654
    %675 = vmatprep.subr.bf16.mxu0 0
    %676 = vmatpush2.bf16.msra.mxu0 0
    %677 = vmatprep.subr.bf16.mxu0 0
    %678 = vmatpush2.bf16.msra.mxu0 0
    %679 = vmatprep.subr.bf16.mxu0 0
    %680 = vmatpush2.bf16.msra.mxu0 0
    %681 = vmatprep.subr.bf16.mxu0 0
    %682 = vmatpush2.bf16.msra.mxu0 0
    %683 = vmatprep.subr.bf16.mxu0 0
    %684 = vmatpush2.bf16.msra.mxu0 0
    %685 = vmatprep.subr.bf16.mxu0 0
    %686 = vmatpush2.bf16.msra.mxu0 0
    %687 = vmatprep.subr.bf16.mxu0 0
    %688 = vmatpush2.bf16.msra.mxu0 0
    %689 = vmatprep.subr.bf16.mxu0 0
    %690 = vmatpush2.bf16.msra.mxu0 0
    %691 = vmatprep.mubr.bf16.mxu0 0
    %692 = vmatmul.mubr.bf16.gmra.mxu0 %v657
    %v693 = vpop.f32.mrf.mxu0
    %v694 = vadd.f32 0.0, %v693
    %v695 = vpop.f32.mrf.mxu0
    %v696 = vpop.f32.mrf.mxu0
    %v697 = vadd.f32 0.0, %v696
    %v698 = vpop.f32.mrf.mxu0
    %699 = vdwg.mxu0
    %v702 = vunpack.c.l.b16 %v419
    %v703 = vunpack.c.l.b16 %v420
    %v704 = vpack.c.b16 %v703, %v702
    %v707 = vsel %vm198, %v418, 0
    %709 = vmatprep.subr.bf16.mxu0 0
    %710 = vmatpush1.bf16.msra.mxu0 0
    %711 = vmatprep.subr.bf16.mxu0 0
    %712 = vmatpush1.bf16.msra.mxu0 0
    %713 = vmatprep.subr.bf16.mxu0 0
    %714 = vmatpush1.bf16.msra.mxu0 0
    %715 = vmatprep.subr.bf16.mxu0 0
    %716 = vmatpush1.bf16.msra.mxu0 0
    %717 = vmatprep.subr.bf16.mxu0 0
    %718 = vmatpush1.bf16.msra.mxu0 0
    %719 = vmatprep.subr.bf16.mxu0 0
    %720 = vmatpush1.bf16.msra.mxu0 0
    %721 = vmatprep.subr.bf16.mxu0 0
    %722 = vmatpush1.bf16.msra.mxu0 0
    %723 = vmatprep.subr.bf16.mxu0 0
    %724 = vmatpush1.bf16.msra.mxu0 %v704
    %725 = vmatprep.subr.bf16.mxu0 0
    %726 = vmatpush2.bf16.msra.mxu0 0
    %727 = vmatprep.subr.bf16.mxu0 0
    %728 = vmatpush2.bf16.msra.mxu0 0
    %729 = vmatprep.subr.bf16.mxu0 0
    %730 = vmatpush2.bf16.msra.mxu0 0
    %731 = vmatprep.subr.bf16.mxu0 0
    %732 = vmatpush2.bf16.msra.mxu0 0
    %733 = vmatprep.subr.bf16.mxu0 0
    %734 = vmatpush2.bf16.msra.mxu0 0
    %735 = vmatprep.subr.bf16.mxu0 0
    %736 = vmatpush2.bf16.msra.mxu0 0
    %737 = vmatprep.subr.bf16.mxu0 0
    %738 = vmatpush2.bf16.msra.mxu0 0
    %739 = vmatprep.subr.bf16.mxu0 0
    %740 = vmatpush2.bf16.msra.mxu0 0
    %741 = vmatprep.mubr.bf16.mxu0 0
    %742 = vmatmul.mubr.bf16.gmra.mxu0 %v707
    %v743 = vpop.f32.mrf.mxu0
    %v744 = vadd.f32 %v694, %v743
    %v745 = vpop.f32.mrf.mxu0
    %v746 = vpop.f32.mrf.mxu0
    %v747 = vadd.f32 %v697, %v746
    %v748 = vpop.f32.mrf.mxu0
    %749 = vdwg.mxu0
    %750 = vrot.lane.b32.xlu0 %v191, 96
    %v751 = vpop.permute.xlu0 %750
    %752 = vrot.lane.b32.xlu0 %v191, 32
    %v753 = vpop.permute.xlu0 %752
    %v755 = vsel %vm198, %v751, 0
    %v758 = vsel %vm198, %v753, 0
    %760 = vmatprep.subr.bf16.mxu0 0
    %761 = vmatpush1.bf16.xpose.msra.mxu0 0
    %762 = vmatprep.subr.bf16.mxu0 0
    %763 = vmatpush1.bf16.xpose.msra.mxu0 0
    %764 = vmatprep.subr.bf16.mxu0 0
    %765 = vmatpush1.bf16.xpose.msra.mxu0 0
    %766 = vmatprep.subr.bf16.mxu0 0
    %767 = vmatpush1.bf16.xpose.msra.mxu0 0
    %768 = vmatprep.subr.bf16.mxu0 0
    %769 = vmatpush1.bf16.xpose.msra.mxu0 0
    %770 = vmatprep.subr.bf16.mxu0 0
    %771 = vmatpush1.bf16.xpose.msra.mxu0 0
    %772 = vmatprep.subr.bf16.mxu0 0
    %773 = vmatpush1.bf16.xpose.msra.mxu0 0
    %774 = vmatprep.subr.bf16.mxu0 0
    %775 = vmatpush1.bf16.xpose.msra.mxu0 %v758
    %776 = vmatprep.subr.bf16.mxu0 0
    %777 = vmatpush2.bf16.xpose.msra.mxu0 0
    %778 = vmatprep.subr.bf16.mxu0 0
    %779 = vmatpush2.bf16.xpose.msra.mxu0 0
    %780 = vmatprep.subr.bf16.mxu0 0
    %781 = vmatpush2.bf16.xpose.msra.mxu0 0
    %782 = vmatprep.subr.bf16.mxu0 0
    %783 = vmatpush2.bf16.xpose.msra.mxu0 0
    %784 = vmatprep.subr.bf16.mxu0 0
    %785 = vmatpush2.bf16.xpose.msra.mxu0 0
    %786 = vmatprep.subr.bf16.mxu0 0
    %787 = vmatpush2.bf16.xpose.msra.mxu0 0
    %788 = vmatprep.subr.bf16.mxu0 0
    %789 = vmatpush2.bf16.xpose.msra.mxu0 0
    %790 = vmatprep.subr.bf16.mxu0 0
    %791 = vmatpush2.bf16.xpose.msra.mxu0 0
    %792 = vmatprep.mubr.bf16.mxu0 0
    %793 = vmatmul.mubr.bf16.gmra.mxu0 %v755
    %v794 = vpop.f32.mrf.mxu0
    %v795 = vadd.f32 0.0, %v794
    %v796 = vpop.f32.mrf.mxu0
    %v797 = vpop.f32.mrf.mxu0
    %v798 = vpop.f32.mrf.mxu0
    %799 = vdwg.mxu0
    %800 = vrot.lane.b32.xlu0 %v192, 96
    %v801 = vpop.permute.xlu0 %800
    %802 = vrot.lane.b32.xlu0 %v192, 32
    %v803 = vpop.permute.xlu0 %802
    %v805 = vsel %vm198, %v801, 0
    %v808 = vsel %vm198, %v803, 0
    %810 = vmatprep.subr.bf16.mxu0 0
    %811 = vmatpush1.bf16.xpose.msra.mxu0 0
    %812 = vmatprep.subr.bf16.mxu0 0
    %813 = vmatpush1.bf16.xpose.msra.mxu0 0
    %814 = vmatprep.subr.bf16.mxu0 0
    %815 = vmatpush1.bf16.xpose.msra.mxu0 0
    %816 = vmatprep.subr.bf16.mxu0 0
    %817 = vmatpush1.bf16.xpose.msra.mxu0 0
    %818 = vmatprep.subr.bf16.mxu0 0
    %819 = vmatpush1.bf16.xpose.msra.mxu0 0
    %820 = vmatprep.subr.bf16.mxu0 0
    %821 = vmatpush1.bf16.xpose.msra.mxu0 0
    %822 = vmatprep.subr.bf16.mxu0 0
    %823 = vmatpush1.bf16.xpose.msra.mxu0 0
    %824 = vmatprep.subr.bf16.mxu0 0
    %825 = vmatpush1.bf16.xpose.msra.mxu0 %v808
    %826 = vmatprep.subr.bf16.mxu0 0
    %827 = vmatpush2.bf16.xpose.msra.mxu0 0
    %828 = vmatprep.subr.bf16.mxu0 0
    %829 = vmatpush2.bf16.xpose.msra.mxu0 0
    %830 = vmatprep.subr.bf16.mxu0 0
    %831 = vmatpush2.bf16.xpose.msra.mxu0 0
    %832 = vmatprep.subr.bf16.mxu0 0
    %833 = vmatpush2.bf16.xpose.msra.mxu0 0
    %834 = vmatprep.subr.bf16.mxu0 0
    %835 = vmatpush2.bf16.xpose.msra.mxu0 0
    %836 = vmatprep.subr.bf16.mxu0 0
    %837 = vmatpush2.bf16.xpose.msra.mxu0 0
    %838 = vmatprep.subr.bf16.mxu0 0
    %839 = vmatpush2.bf16.xpose.msra.mxu0 0
    %840 = vmatprep.subr.bf16.mxu0 0
    %841 = vmatpush2.bf16.xpose.msra.mxu0 0
    %842 = vmatprep.mubr.bf16.mxu0 0
    %843 = vmatmul.mubr.bf16.gmra.mxu0 %v805
    %v844 = vpop.f32.mrf.mxu0
    %v845 = vadd.f32 0.0, %v844
    %v846 = vpop.f32.mrf.mxu0
    %v847 = vpop.f32.mrf.mxu0
    %v848 = vpop.f32.mrf.mxu0
    %849 = vdwg.mxu0
    %v850 = vmul.f32 %v795, 0.25
    %v851 = vmul.f32 %v845, 0.25
    %v852 = vsel %vm297, %v850, -inf
    %v853 = vsel %vm297, %v851, -inf
    %v854 = vsel %vm300, %v852, -inf
    %855 = vmax.xlane.f32.xlu0 %v854
    %v856 = vpop.xlane.xlu0 %855
    %v857 = vsel %vm300, %v853, -inf
    %858 = vmax.xlane.f32.xlu0 %v857
    %v859 = vpop.xlane.xlu0 %858
    %v860 = vsub.f32 %v852, %v856
    %v861 = vsub.f32 %v853, %v859
    %v862 = vmul.f32 %v860, 1.442695
    %v863 = vpow.pop %v862
    %v864 = vmul.f32 %v861, 1.442695
    %v865 = vpow.pop %v864
    %v866 = vsel %vm300, %v863, 0.0
    %867 = vadd.xlane.f32.xlu0 %v866
    %v868 = vpop.xlane.xlu0 %867
    %v869 = vsel %vm300, %v865, 0.0
    %870 = vadd.xlane.f32.xlu0 %v869
    %v871 = vpop.xlane.xlu0 %870
    %v872 = vrcp.pop %v868
    %v873 = vrcp.pop %v871
    %v874 = vmul.f32 %v863, %v872
    %v875 = vmul.f32 %v865, %v873
    %v876 = vpack.c.bf16 %v874, %v874
    %v877 = vpack.c.bf16 %v875, %v875
    %878 = vrot.lane.b32.xlu0 %v193, 96
    %v879 = vpop.permute.xlu0 %878
    %v881 = vsel %vm300, %v876, 0
    %v884 = vsel %vm328, %v879, 0
    %886 = vmatprep.subr.bf16.mxu0 0
    %887 = vmatpush1.bf16.msra.mxu0 0
    %888 = vmatprep.subr.bf16.mxu0 0
    %889 = vmatpush1.bf16.msra.mxu0 0
    %890 = vmatprep.subr.bf16.mxu0 0
    %891 = vmatpush1.bf16.msra.mxu0 0
    %892 = vmatprep.subr.bf16.mxu0 0
    %893 = vmatpush1.bf16.msra.mxu0 0
    %894 = vmatprep.subr.bf16.mxu0 0
    %895 = vmatpush1.bf16.msra.mxu0 0
    %896 = vmatprep.subr.bf16.mxu0 0
    %897 = vmatpush1.bf16.msra.mxu0 0
    %898 = vmatprep.subr.bf16.mxu0 0
    %899 = vmatpush1.bf16.msra.mxu0 0
    %900 = vmatprep.subr.bf16.mxu0 0
    %901 = vmatpush1.bf16.msra.mxu0 %v884
    %902 = vmatprep.subr.bf16.mxu0 0
    %903 = vmatpush2.bf16.msra.mxu0 0
    %904 = vmatprep.subr.bf16.mxu0 0
    %905 = vmatpush2.bf16.msra.mxu0 0
    %906 = vmatprep.subr.bf16.mxu0 0
    %907 = vmatpush2.bf16.msra.mxu0 0
    %908 = vmatprep.subr.bf16.mxu0 0
    %909 = vmatpush2.bf16.msra.mxu0 0
    %910 = vmatprep.subr.bf16.mxu0 0
    %911 = vmatpush2.bf16.msra.mxu0 0
    %912 = vmatprep.subr.bf16.mxu0 0
    %913 = vmatpush2.bf16.msra.mxu0 0
    %914 = vmatprep.subr.bf16.mxu0 0
    %915 = vmatpush2.bf16.msra.mxu0 0
    %916 = vmatprep.subr.bf16.mxu0 0
    %917 = vmatpush2.bf16.msra.mxu0 0
    %918 = vmatprep.mubr.bf16.mxu0 0
    %919 = vmatmul.mubr.bf16.gmra.mxu0 %v881
    %v920 = vpop.f32.mrf.mxu0
    %v921 = vadd.f32 0.0, %v920
    %v922 = vpop.f32.mrf.mxu0
    %v923 = vpop.f32.mrf.mxu0
    %v924 = vpop.f32.mrf.mxu0
    %925 = vdwg.mxu0
    %926 = vrot.lane.b32.xlu0 %v194, 96
    %v927 = vpop.permute.xlu0 %926
    %v929 = vsel %vm300, %v877, 0
    %v932 = vsel %vm328, %v927, 0
    %934 = vmatprep.subr.bf16.mxu0 0
    %935 = vmatpush1.bf16.msra.mxu0 0
    %936 = vmatprep.subr.bf16.mxu0 0
    %937 = vmatpush1.bf16.msra.mxu0 0
    %938 = vmatprep.subr.bf16.mxu0 0
    %939 = vmatpush1.bf16.msra.mxu0 0
    %940 = vmatprep.subr.bf16.mxu0 0
    %941 = vmatpush1.bf16.msra.mxu0 0
    %942 = vmatprep.subr.bf16.mxu0 0
    %943 = vmatpush1.bf16.msra.mxu0 0
    %944 = vmatprep.subr.bf16.mxu0 0
    %945 = vmatpush1.bf16.msra.mxu0 0
    %946 = vmatprep.subr.bf16.mxu0 0
    %947 = vmatpush1.bf16.msra.mxu0 0
    %948 = vmatprep.subr.bf16.mxu0 0
    %949 = vmatpush1.bf16.msra.mxu0 %v932
    %950 = vmatprep.subr.bf16.mxu0 0
    %951 = vmatpush2.bf16.msra.mxu0 0
    %952 = vmatprep.subr.bf16.mxu0 0
    %953 = vmatpush2.bf16.msra.mxu0 0
    %954 = vmatprep.subr.bf16.mxu0 0
    %955 = vmatpush2.bf16.msra.mxu0 0
    %956 = vmatprep.subr.bf16.mxu0 0
    %957 = vmatpush2.bf16.msra.mxu0 0
    %958 = vmatprep.subr.bf16.mxu0 0
    %959 = vmatpush2.bf16.msra.mxu0 0
    %960 = vmatprep.subr.bf16.mxu0 0
    %961 = vmatpush2.bf16.msra.mxu0 0
    %962 = vmatprep.subr.bf16.mxu0 0
    %963 = vmatpush2.bf16.msra.mxu0 0
    %964 = vmatprep.subr.bf16.mxu0 0
    %965 = vmatpush2.bf16.msra.mxu0 0
    %966 = vmatprep.mubr.bf16.mxu0 0
    %967 = vmatmul.mubr.bf16.gmra.mxu0 %v929
    %v968 = vpop.f32.mrf.mxu0
    %v969 = vadd.f32 0.0, %v968
    %v970 = vpop.f32.mrf.mxu0
    %v971 = vpop.f32.mrf.mxu0
    %v972 = vpop.f32.mrf.mxu0
    %973 = vdwg.mxu0
    %v974 = vpack.c.bf16 %v969, %v921
    %v975 = vld [vmem:[%s2 + $0x10] sm:$0xf]
    %v976 = vld [vmem:[%s2 + $0x14] sm:$0xf]
    %v979 = vunpack.c.l.b16 %v975
    %v980 = vunpack.c.l.b16 %v976
    %v981 = vpack.c.b16 %v980, %v979
    %v984 = vsel %vm198, %v974, 0
    %986 = vmatprep.subr.bf16.mxu0 0
    %987 = vmatpush1.bf16.msra.mxu0 0
    %988 = vmatprep.subr.bf16.mxu0 0
    %989 = vmatpush1.bf16.msra.mxu0 0
    %990 = vmatprep.subr.bf16.mxu0 0
    %991 = vmatpush1.bf16.msra.mxu0 0
    %992 = vmatprep.subr.bf16.mxu0 0
    %993 = vmatpush1.bf16.msra.mxu0 0
    %994 = vmatprep.subr.bf16.mxu0 0
    %995 = vmatpush1.bf16.msra.mxu0 0
    %996 = vmatprep.subr.bf16.mxu0 0
    %997 = vmatpush1.bf16.msra.mxu0 0
    %998 = vmatprep.subr.bf16.mxu0 0
    %999 = vmatpush1.bf16.msra.mxu0 0
    %1000 = vmatprep.subr.bf16.mxu0 0
    %1001 = vmatpush1.bf16.msra.mxu0 %v981
    %1002 = vmatprep.subr.bf16.mxu0 0
    %1003 = vmatpush2.bf16.msra.mxu0 0
    %1004 = vmatprep.subr.bf16.mxu0 0
    %1005 = vmatpush2.bf16.msra.mxu0 0
    %1006 = vmatprep.subr.bf16.mxu0 0
    %1007 = vmatpush2.bf16.msra.mxu0 0
    %1008 = vmatprep.subr.bf16.mxu0 0
    %1009 = vmatpush2.bf16.msra.mxu0 0
    %1010 = vmatprep.subr.bf16.mxu0 0
    %1011 = vmatpush2.bf16.msra.mxu0 0
    %1012 = vmatprep.subr.bf16.mxu0 0
    %1013 = vmatpush2.bf16.msra.mxu0 0
    %1014 = vmatprep.subr.bf16.mxu0 0
    %1015 = vmatpush2.bf16.msra.mxu0 0
    %1016 = vmatprep.subr.bf16.mxu0 0
    %1017 = vmatpush2.bf16.msra.mxu0 0
    %1018 = vmatprep.mubr.bf16.mxu0 0
    %1019 = vmatmul.mubr.bf16.gmra.mxu0 %v984
    %v1020 = vpop.f32.mrf.mxu0
    %v1021 = vadd.f32 0.0, %v1020
    %v1022 = vpop.f32.mrf.mxu0
    %v1023 = vpop.f32.mrf.mxu0
    %v1024 = vadd.f32 0.0, %v1023
    %v1025 = vpop.f32.mrf.mxu0
    %1026 = vdwg.mxu0
    %v1027 = vadd.f32 %v744, %v1021
    %v1028 = vadd.f32 %v747, %v1024
    %1029 = vrot.lane.b32.xlu0 %v191, 80
    %v1030 = vpop.permute.xlu0 %1029
    %1031 = vrot.lane.b32.xlu0 %v191, 16
    %v1032 = vpop.permute.xlu0 %1031
    %v1034 = vsel %vm198, %v1030, 0
    %v1037 = vsel %vm198, %v1032, 0
    %1039 = vmatprep.subr.bf16.mxu0 0
    %1040 = vmatpush1.bf16.xpose.msra.mxu0 0
    %1041 = vmatprep.subr.bf16.mxu0 0
    %1042 = vmatpush1.bf16.xpose.msra.mxu0 0
    %1043 = vmatprep.subr.bf16.mxu0 0
    %1044 = vmatpush1.bf16.xpose.msra.mxu0 0
    %1045 = vmatprep.subr.bf16.mxu0 0
    %1046 = vmatpush1.bf16.xpose.msra.mxu0 0
    %1047 = vmatprep.subr.bf16.mxu0 0
    %1048 = vmatpush1.bf16.xpose.msra.mxu0 0
    %1049 = vmatprep.subr.bf16.mxu0 0
    %1050 = vmatpush1.bf16.xpose.msra.mxu0 0
    %1051 = vmatprep.subr.bf16.mxu0 0
    %1052 = vmatpush1.bf16.xpose.msra.mxu0 0
    %1053 = vmatprep.subr.bf16.mxu0 0
    %1054 = vmatpush1.bf16.xpose.msra.mxu0 %v1037
    %1055 = vmatprep.subr.bf16.mxu0 0
    %1056 = vmatpush2.bf16.xpose.msra.mxu0 0
    %1057 = vmatprep.subr.bf16.mxu0 0
    %1058 = vmatpush2.bf16.xpose.msra.mxu0 0
    %1059 = vmatprep.subr.bf16.mxu0 0
    %1060 = vmatpush2.bf16.xpose.msra.mxu0 0
    %1061 = vmatprep.subr.bf16.mxu0 0
    %1062 = vmatpush2.bf16.xpose.msra.mxu0 0
    %1063 = vmatprep.subr.bf16.mxu0 0
    %1064 = vmatpush2.bf16.xpose.msra.mxu0 0
    %1065 = vmatprep.subr.bf16.mxu0 0
    %1066 = vmatpush2.bf16.xpose.msra.mxu0 0
    %1067 = vmatprep.subr.bf16.mxu0 0
    %1068 = vmatpush2.bf16.xpose.msra.mxu0 0
    %1069 = vmatprep.subr.bf16.mxu0 0
    %1070 = vmatpush2.bf16.xpose.msra.mxu0 0
    %1071 = vmatprep.mubr.bf16.mxu0 0
    %1072 = vmatmul.mubr.bf16.gmra.mxu0 %v1034
    %v1073 = vpop.f32.mrf.mxu0
    %v1074 = vadd.f32 0.0, %v1073
    %v1075 = vpop.f32.mrf.mxu0
    %v1076 = vpop.f32.mrf.mxu0
    %v1077 = vpop.f32.mrf.mxu0
    %1078 = vdwg.mxu0
    %1079 = vrot.lane.b32.xlu0 %v192, 80
    %v1080 = vpop.permute.xlu0 %1079
    %1081 = vrot.lane.b32.xlu0 %v192, 16
    %v1082 = vpop.permute.xlu0 %1081
    %v1084 = vsel %vm198, %v1080, 0
    %v1087 = vsel %vm198, %v1082, 0
    %1089 = vmatprep.subr.bf16.mxu0 0
    %1090 = vmatpush1.bf16.xpose.msra.mxu0 0
    %1091 = vmatprep.subr.bf16.mxu0 0
    %1092 = vmatpush1.bf16.xpose.msra.mxu0 0
    %1093 = vmatprep.subr.bf16.mxu0 0
    %1094 = vmatpush1.bf16.xpose.msra.mxu0 0
    %1095 = vmatprep.subr.bf16.mxu0 0
    %1096 = vmatpush1.bf16.xpose.msra.mxu0 0
    %1097 = vmatprep.subr.bf16.mxu0 0
    %1098 = vmatpush1.bf16.xpose.msra.mxu0 0
    %1099 = vmatprep.subr.bf16.mxu0 0
    %1100 = vmatpush1.bf16.xpose.msra.mxu0 0
    %1101 = vmatprep.subr.bf16.mxu0 0
    %1102 = vmatpush1.bf16.xpose.msra.mxu0 0
    %1103 = vmatprep.subr.bf16.mxu0 0
    %1104 = vmatpush1.bf16.xpose.msra.mxu0 %v1087
    %1105 = vmatprep.subr.bf16.mxu0 0
    %1106 = vmatpush2.bf16.xpose.msra.mxu0 0
    %1107 = vmatprep.subr.bf16.mxu0 0
    %1108 = vmatpush2.bf16.xpose.msra.mxu0 0
    %1109 = vmatprep.subr.bf16.mxu0 0
    %1110 = vmatpush2.bf16.xpose.msra.mxu0 0
    %1111 = vmatprep.subr.bf16.mxu0 0
    %1112 = vmatpush2.bf16.xpose.msra.mxu0 0
    %1113 = vmatprep.subr.bf16.mxu0 0
    %1114 = vmatpush2.bf16.xpose.msra.mxu0 0
    %1115 = vmatprep.subr.bf16.mxu0 0
    %1116 = vmatpush2.bf16.xpose.msra.mxu0 0
    %1117 = vmatprep.subr.bf16.mxu0 0
    %1118 = vmatpush2.bf16.xpose.msra.mxu0 0
    %1119 = vmatprep.subr.bf16.mxu0 0
    %1120 = vmatpush2.bf16.xpose.msra.mxu0 0
    %1121 = vmatprep.mubr.bf16.mxu0 0
    %1122 = vmatmul.mubr.bf16.gmra.mxu0 %v1084
    %v1123 = vpop.f32.mrf.mxu0
    %v1124 = vadd.f32 0.0, %v1123
    %v1125 = vpop.f32.mrf.mxu0
    %v1126 = vpop.f32.mrf.mxu0
    %v1127 = vpop.f32.mrf.mxu0
    %1128 = vdwg.mxu0
    %v1129 = vmul.f32 %v1074, 0.25
    %v1130 = vmul.f32 %v1124, 0.25
    %v1131 = vsel %vm297, %v1129, -inf
    %v1132 = vsel %vm297, %v1130, -inf
    %v1133 = vsel %vm300, %v1131, -inf
    %1134 = vmax.xlane.f32.xlu0 %v1133
    %v1135 = vpop.xlane.xlu0 %1134
    %v1136 = vsel %vm300, %v1132, -inf
    %1137 = vmax.xlane.f32.xlu0 %v1136
    %v1138 = vpop.xlane.xlu0 %1137
    %v1139 = vsub.f32 %v1131, %v1135
    %v1140 = vsub.f32 %v1132, %v1138
    %v1141 = vmul.f32 %v1139, 1.442695
    %v1142 = vpow.pop %v1141
    %v1143 = vmul.f32 %v1140, 1.442695
    %v1144 = vpow.pop %v1143
    %v1145 = vsel %vm300, %v1142, 0.0
    %1146 = vadd.xlane.f32.xlu0 %v1145
    %v1147 = vpop.xlane.xlu0 %1146
    %v1148 = vsel %vm300, %v1144, 0.0
    %1149 = vadd.xlane.f32.xlu0 %v1148
    %v1150 = vpop.xlane.xlu0 %1149
    %v1151 = vrcp.pop %v1147
    %v1152 = vrcp.pop %v1150
    %v1153 = vmul.f32 %v1142, %v1151
    %v1154 = vmul.f32 %v1144, %v1152
    %v1155 = vpack.c.bf16 %v1153, %v1153
    %v1156 = vpack.c.bf16 %v1154, %v1154
    %1157 = vrot.lane.b32.xlu0 %v193, 80
    %v1158 = vpop.permute.xlu0 %1157
    %v1160 = vsel %vm300, %v1155, 0
    %v1163 = vsel %vm328, %v1158, 0
    %1165 = vmatprep.subr.bf16.mxu0 0
    %1166 = vmatpush1.bf16.msra.mxu0 0
    %1167 = vmatprep.subr.bf16.mxu0 0
    %1168 = vmatpush1.bf16.msra.mxu0 0
    %1169 = vmatprep.subr.bf16.mxu0 0
    %1170 = vmatpush1.bf16.msra.mxu0 0
    %1171 = vmatprep.subr.bf16.mxu0 0
    %1172 = vmatpush1.bf16.msra.mxu0 0
    %1173 = vmatprep.subr.bf16.mxu0 0
    %1174 = vmatpush1.bf16.msra.mxu0 0
    %1175 = vmatprep.subr.bf16.mxu0 0
    %1176 = vmatpush1.bf16.msra.mxu0 0
    %1177 = vmatprep.subr.bf16.mxu0 0
    %1178 = vmatpush1.bf16.msra.mxu0 0
    %1179 = vmatprep.subr.bf16.mxu0 0
    %1180 = vmatpush1.bf16.msra.mxu0 %v1163
    %1181 = vmatprep.subr.bf16.mxu0 0
    %1182 = vmatpush2.bf16.msra.mxu0 0
    %1183 = vmatprep.subr.bf16.mxu0 0
    %1184 = vmatpush2.bf16.msra.mxu0 0
    %1185 = vmatprep.subr.bf16.mxu0 0
    %1186 = vmatpush2.bf16.msra.mxu0 0
    %1187 = vmatprep.subr.bf16.mxu0 0
    %1188 = vmatpush2.bf16.msra.mxu0 0
    %1189 = vmatprep.subr.bf16.mxu0 0
    %1190 = vmatpush2.bf16.msra.mxu0 0
    %1191 = vmatprep.subr.bf16.mxu0 0
    %1192 = vmatpush2.bf16.msra.mxu0 0
    %1193 = vmatprep.subr.bf16.mxu0 0
    %1194 = vmatpush2.bf16.msra.mxu0 0
    %1195 = vmatprep.subr.bf16.mxu0 0
    %1196 = vmatpush2.bf16.msra.mxu0 0
    %1197 = vmatprep.mubr.bf16.mxu0 0
    %1198 = vmatmul.mubr.bf16.gmra.mxu0 %v1160
    %v1199 = vpop.f32.mrf.mxu0
    %v1200 = vadd.f32 0.0, %v1199
    %v1201 = vpop.f32.mrf.mxu0
    %v1202 = vpop.f32.mrf.mxu0
    %v1203 = vpop.f32.mrf.mxu0
    %1204 = vdwg.mxu0
    %1205 = vrot.lane.b32.xlu0 %v194, 80
    %v1206 = vpop.permute.xlu0 %1205
    %v1208 = vsel %vm300, %v1156, 0
    %v1211 = vsel %vm328, %v1206, 0
    %1213 = vmatprep.subr.bf16.mxu0 0
    %1214 = vmatpush1.bf16.msra.mxu0 0
    %1215 = vmatprep.subr.bf16.mxu0 0
    %1216 = vmatpush1.bf16.msra.mxu0 0
    %1217 = vmatprep.subr.bf16.mxu0 0
    %1218 = vmatpush1.bf16.msra.mxu0 0
    %1219 = vmatprep.subr.bf16.mxu0 0
    %1220 = vmatpush1.bf16.msra.mxu0 0
    %1221 = vmatprep.subr.bf16.mxu0 0
    %1222 = vmatpush1.bf16.msra.mxu0 0
    %1223 = vmatprep.subr.bf16.mxu0 0
    %1224 = vmatpush1.bf16.msra.mxu0 0
    %1225 = vmatprep.subr.bf16.mxu0 0
    %1226 = vmatpush1.bf16.msra.mxu0 0
    %1227 = vmatprep.subr.bf16.mxu0 0
    %1228 = vmatpush1.bf16.msra.mxu0 %v1211
    %1229 = vmatprep.subr.bf16.mxu0 0
    %1230 = vmatpush2.bf16.msra.mxu0 0
    %1231 = vmatprep.subr.bf16.mxu0 0
    %1232 = vmatpush2.bf16.msra.mxu0 0
    %1233 = vmatprep.subr.bf16.mxu0 0
    %1234 = vmatpush2.bf16.msra.mxu0 0
    %1235 = vmatprep.subr.bf16.mxu0 0
    %1236 = vmatpush2.bf16.msra.mxu0 0
    %1237 = vmatprep.subr.bf16.mxu0 0
    %1238 = vmatpush2.bf16.msra.mxu0 0
    %1239 = vmatprep.subr.bf16.mxu0 0
    %1240 = vmatpush2.bf16.msra.mxu0 0
    %1241 = vmatprep.subr.bf16.mxu0 0
    %1242 = vmatpush2.bf16.msra.mxu0 0
    %1243 = vmatprep.subr.bf16.mxu0 0
    %1244 = vmatpush2.bf16.msra.mxu0 0
    %1245 = vmatprep.mubr.bf16.mxu0 0
    %1246 = vmatmul.mubr.bf16.gmra.mxu0 %v1208
    %v1247 = vpop.f32.mrf.mxu0
    %v1248 = vadd.f32 0.0, %v1247
    %v1249 = vpop.f32.mrf.mxu0
    %v1250 = vpop.f32.mrf.mxu0
    %v1251 = vpop.f32.mrf.mxu0
    %1252 = vdwg.mxu0
    %v1253 = vpack.c.bf16 %v1248, %v1200
    %v1254 = vld [vmem:[%s2 + $0x18] sm:$0xf]
    %v1255 = vld [vmem:[%s2 + $0x1c] sm:$0xf]
    %v1258 = vunpack.c.l.b16 %v1254
    %v1259 = vunpack.c.l.b16 %v1255
    %v1260 = vpack.c.b16 %v1259, %v1258
    %v1263 = vsel %vm198, %v1253, 0
    %1265 = vmatprep.subr.bf16.mxu0 0
    %1266 = vmatpush1.bf16.msra.mxu0 0
    %1267 = vmatprep.subr.bf16.mxu0 0
    %1268 = vmatpush1.bf16.msra.mxu0 0
    %1269 = vmatprep.subr.bf16.mxu0 0
    %1270 = vmatpush1.bf16.msra.mxu0 0
    %1271 = vmatprep.subr.bf16.mxu0 0
    %1272 = vmatpush1.bf16.msra.mxu0 0
    %1273 = vmatprep.subr.bf16.mxu0 0
    %1274 = vmatpush1.bf16.msra.mxu0 0
    %1275 = vmatprep.subr.bf16.mxu0 0
    %1276 = vmatpush1.bf16.msra.mxu0 0
    %1277 = vmatprep.subr.bf16.mxu0 0
    %1278 = vmatpush1.bf16.msra.mxu0 0
    %1279 = vmatprep.subr.bf16.mxu0 0
    %1280 = vmatpush1.bf16.msra.mxu0 %v1260
    %1281 = vmatprep.subr.bf16.mxu0 0
    %1282 = vmatpush2.bf16.msra.mxu0 0
    %1283 = vmatprep.subr.bf16.mxu0 0
    %1284 = vmatpush2.bf16.msra.mxu0 0
    %1285 = vmatprep.subr.bf16.mxu0 0
    %1286 = vmatpush2.bf16.msra.mxu0 0
    %1287 = vmatprep.subr.bf16.mxu0 0
    %1288 = vmatpush2.bf16.msra.mxu0 0
    %1289 = vmatprep.subr.bf16.mxu0 0
    %1290 = vmatpush2.bf16.msra.mxu0 0
    %1291 = vmatprep.subr.bf16.mxu0 0
    %1292 = vmatpush2.bf16.msra.mxu0 0
    %1293 = vmatprep.subr.bf16.mxu0 0
    %1294 = vmatpush2.bf16.msra.mxu0 0
    %1295 = vmatprep.subr.bf16.mxu0 0
    %1296 = vmatpush2.bf16.msra.mxu0 0
    %1297 = vmatprep.mubr.bf16.mxu0 0
    %1298 = vmatmul.mubr.bf16.gmra.mxu0 %v1263
    %v1299 = vpop.f32.mrf.mxu0
    %v1300 = vadd.f32 0.0, %v1299
    %v1301 = vpop.f32.mrf.mxu0
    %v1302 = vpop.f32.mrf.mxu0
    %v1303 = vadd.f32 0.0, %v1302
    %v1304 = vpop.f32.mrf.mxu0
    %1305 = vdwg.mxu0
    %v1306 = vadd.f32 %v1027, %v1300
    %v1307 = vadd.f32 %v1028, %v1303
    %v1308 = vld [vmem:[%s3] sm:$0x1]
    %v1310 = vlaneseq
    %v1311 = vshrl.u32 %v1310, 7
    %v1312 = vsub.s32 0, %v1311
    %v1313 = vrot.slane %v1308, %v1312
    %v1315 = vadd.f32 %v1306, %v1313
    %v1316 = vadd.f32 %v1307, %v1313
    %v1317 = vadd.f32 %v43, %v1315
    %v1318 = vadd.f32 %v44, %v1316
    %v1319 = vld [vmem:[%s10] sm:$0x1]
    %v1320 = vld [vmem:[%s11] sm:$0x1]
    %v1321 = vsel %vm47, %v1317, 0.0
    %1322 = vadd.xlane.f32.xlu0 %v1321
    %v1323 = vpop.xlane.xlu0 %1322
    %v1324 = vsel %vm47, %v1318, 0.0
    %1325 = vadd.xlane.f32.xlu0 %v1324
    %v1326 = vpop.xlane.xlu0 %1325
    %v1327 = vmul.f32 %v1323, %v54
    %v1328 = vmul.f32 %v1326, %v54
    %v1329 = vsub.f32 %v1317, %v1327
    %v1330 = vsub.f32 %v1318, %v1328
    %v1331 = vmul.f32 %v1329, %v1329
    %v1332 = vmul.f32 %v1330, %v1330
    %v1333 = vsel %vm47, %v1331, 0.0
    %1334 = vadd.xlane.f32.xlu0 %v1333
    %v1335 = vpop.xlane.xlu0 %1334
    %v1336 = vsel %vm47, %v1332, 0.0
    %1337 = vadd.xlane.f32.xlu0 %v1336
    %v1338 = vpop.xlane.xlu0 %1337
    %v1339 = vmul.f32 %v1335, %v54
    %v1340 = vmul.f32 %v1338, %v54
    %v1341 = vadd.f32 %v1339, 1e-05
    %v1342 = vadd.f32 %v1340, 1e-05
    %v1343 = vrsqrt.pop %v1341
    %v1344 = vrsqrt.pop %v1342
    %v1345 = vmul.f32 %v1329, %v1343
    %v1346 = vmul.f32 %v1330, %v1344
    %v1348 = vlaneseq
    %v1349 = vshrl.u32 %v1348, 7
    %v1350 = vsub.s32 0, %v1349
    %v1351 = vrot.slane %v1319, %v1350
    %v1353 = vmul.f32 %v1345, %v1351
    %v1354 = vmul.f32 %v1346, %v1351
    %v1356 = vlaneseq
    %v1357 = vshrl.u32 %v1356, 7
    %v1358 = vsub.s32 0, %v1357
    %v1359 = vrot.slane %v1320, %v1358
    %v1361 = vadd.f32 %v1353, %v1359
    %v1362 = vadd.f32 %v1354, %v1359
    %v1363 = vpack.c.bf16 %v1362, %v1361
    %v1364 = vld [vmem:[%s4] sm:$0xff]
    %v1365 = vld [vmem:[%s4 + $0x8] sm:$0xff]
    %v1366 = vld [vmem:[%s4 + $0x10] sm:$0xff]
    %v1367 = vld [vmem:[%s4 + $0x18] sm:$0xff]
    %v1368 = vld [vmem:[%s4 + $0x20] sm:$0xff]
    %v1369 = vld [vmem:[%s4 + $0x28] sm:$0xff]
    %v1370 = vld [vmem:[%s4 + $0x30] sm:$0xff]
    %v1371 = vld [vmem:[%s4 + $0x38] sm:$0xff]
    %v1372 = vld [vmem:[%s5] sm:$0x3]
    %v1374 = vlaneseq
    %v1375 = vshrl.u32 %v1374, 7
    %v1376 = vsub.s32 0, %v1375
    %v1377 = vrot.slane %v1372, %v1376
    %v1378 = vlaneseq
    %v1379 = vshrl.u32 %v1378, 7
    %v1380 = vsub.s32 1, %v1379
    %v1381 = vrot.slane %v1372, %v1380
    %v1392 = vunpack.c.l.b16 %v1364
    %v1393 = vunpack.c.h.b16 %v1364
    %v1394 = vunpack.c.l.b16 %v1365
    %v1395 = vunpack.c.h.b16 %v1365
    %v1396 = vunpack.c.l.b16 %v1366
    %v1397 = vunpack.c.h.b16 %v1366
    %v1398 = vunpack.c.l.b16 %v1367
    %v1399 = vunpack.c.h.b16 %v1367
    %v1400 = vunpack.c.l.b16 %v1368
    %v1401 = vunpack.c.h.b16 %v1368
    %v1402 = vunpack.c.l.b16 %v1369
    %v1403 = vunpack.c.h.b16 %v1369
    %v1404 = vunpack.c.l.b16 %v1370
    %v1405 = vunpack.c.h.b16 %v1370
    %v1406 = vunpack.c.l.b16 %v1371
    %v1407 = vunpack.c.h.b16 %v1371
    %v1408 = vpack.c.b16 %v1394, %v1392
    %v1409 = vpack.c.b16 %v1395, %v1393
    %v1410 = vpack.c.b16 %v1398, %v1396
    %v1411 = vpack.c.b16 %v1399, %v1397
    %v1412 = vpack.c.b16 %v1402, %v1400
    %v1413 = vpack.c.b16 %v1403, %v1401
    %v1414 = vpack.c.b16 %v1406, %v1404
    %v1415 = vpack.c.b16 %v1407, %v1405
    %v1425 = vsel %vm47, %v1363, 0
    %1427 = vmatprep.subr.bf16.mxu0 0
    %1428 = vmatpush1.bf16.msra.mxu0 0
    %1429 = vmatprep.subr.bf16.mxu0 0
    %1430 = vmatpush1.bf16.msra.mxu0 0
    %1431 = vmatprep.subr.bf16.mxu0 0
    %1432 = vmatpush1.bf16.msra.mxu0 0
    %1433 = vmatprep.subr.bf16.mxu0 0
    %1434 = vmatpush1.bf16.msra.mxu0 0
    %1435 = vmatprep.subr.bf16.mxu0 %v1415
    %1436 = vmatpush1.bf16.msra.mxu0 %v1414
    %1437 = vmatprep.subr.bf16.mxu0 %v1413
    %1438 = vmatpush1.bf16.msra.mxu0 %v1412
    %1439 = vmatprep.subr.bf16.mxu0 %v1411
    %1440 = vmatpush1.bf16.msra.mxu0 %v1410
    %1441 = vmatprep.subr.bf16.mxu0 %v1409
    %1442 = vmatpush1.bf16.msra.mxu0 %v1408
    %1443 = vmatprep.subr.bf16.mxu0 0
    %1444 = vmatpush2.bf16.msra.mxu0 0
    %1445 = vmatprep.subr.bf16.mxu0 0
    %1446 = vmatpush2.bf16.msra.mxu0 0
    %1447 = vmatprep.subr.bf16.mxu0 0
    %1448 = vmatpush2.bf16.msra.mxu0 0
    %1449 = vmatprep.subr.bf16.mxu0 0
    %1450 = vmatpush2.bf16.msra.mxu0 0
    %1451 = vmatprep.subr.bf16.mxu0 0
    %1452 = vmatpush2.bf16.msra.mxu0 0
    %1453 = vmatprep.subr.bf16.mxu0 0
    %1454 = vmatpush2.bf16.msra.mxu0 0
    %1455 = vmatprep.subr.bf16.mxu0 0
    %1456 = vmatpush2.bf16.msra.mxu0 0
    %1457 = vmatprep.subr.bf16.mxu0 0
    %1458 = vmatpush2.bf16.msra.mxu0 0
    %1459 = vmatprep.mubr.bf16.mxu0 0
    %1460 = vmatmul.mubr.bf16.gmra.mxu0 %v1425
    %v1461 = vpop.f32.mrf.mxu0
    %v1462 = vadd.f32 %v1377, %v1461
    %v1463 = vpop.f32.mrf.mxu0
    %v1464 = vadd.f32 %v1381, %v1463
    %v1465 = vpop.f32.mrf.mxu0
    %v1466 = vadd.f32 %v1377, %v1465
    %v1467 = vpop.f32.mrf.mxu0
    %v1468 = vadd.f32 %v1381, %v1467
    %1469 = vdwg.mxu0
    %v1470 = vmax.f32 %v1462, 0.0
    %v1471 = vmax.f32 %v1464, 0.0
    %v1472 = vmax.f32 %v1466, 0.0
    %v1473 = vmax.f32 %v1468, 0.0
    %v1474 = vpack.c.bf16 %v1472, %v1470
    %v1475 = vpack.c.bf16 %v1473, %v1471
    %v1476 = vld [vmem:[%s6] sm:$0xf]
    %v1477 = vld [vmem:[%s6 + $0x4] sm:$0xf]
    %v1478 = vld [vmem:[%s6 + $0x8] sm:$0xf]
    %v1479 = vld [vmem:[%s6 + $0xc] sm:$0xf]
    %v1480 = vld [vmem:[%s6 + $0x10] sm:$0xf]
    %v1481 = vld [vmem:[%s6 + $0x14] sm:$0xf]
    %v1482 = vld [vmem:[%s6 + $0x18] sm:$0xf]
    %v1483 = vld [vmem:[%s6 + $0x1c] sm:$0xf]
    %v1484 = vld [vmem:[%s6 + $0x20] sm:$0xf]
    %v1485 = vld [vmem:[%s6 + $0x24] sm:$0xf]
    %v1486 = vld [vmem:[%s6 + $0x28] sm:$0xf]
    %v1487 = vld [vmem:[%s6 + $0x2c] sm:$0xf]
    %v1488 = vld [vmem:[%s6 + $0x30] sm:$0xf]
    %v1489 = vld [vmem:[%s6 + $0x34] sm:$0xf]
    %v1490 = vld [vmem:[%s6 + $0x38] sm:$0xf]
    %v1491 = vld [vmem:[%s6 + $0x3c] sm:$0xf]
    %v1492 = vld [vmem:[%s6 + $0x40] sm:$0xf]
    %v1493 = vld [vmem:[%s6 + $0x44] sm:$0xf]
    %v1494 = vld [vmem:[%s6 + $0x48] sm:$0xf]
    %v1495 = vld [vmem:[%s6 + $0x4c] sm:$0xf]
    %v1496 = vld [vmem:[%s6 + $0x50] sm:$0xf]
    %v1497 = vld [vmem:[%s6 + $0x54] sm:$0xf]
    %v1498 = vld [vmem:[%s6 + $0x58] sm:$0xf]
    %v1499 = vld [vmem:[%s6 + $0x5c] sm:$0xf]
    %v1500 = vld [vmem:[%s6 + $0x60] sm:$0xf]
    %v1501 = vld [vmem:[%s6 + $0x64] sm:$0xf]
    %v1502 = vld [vmem:[%s6 + $0x68] sm:$0xf]
    %v1503 = vld [vmem:[%s6 + $0x6c] sm:$0xf]
    %v1504 = vld [vmem:[%s6 + $0x70] sm:$0xf]
    %v1505 = vld [vmem:[%s6 + $0x74] sm:$0xf]
    %v1506 = vld [vmem:[%s6 + $0x78] sm:$0xf]
    %v1507 = vld [vmem:[%s6 + $0x7c] sm:$0xf]
    %v1508 = vld [vmem:[%s7] sm:$0x1]
    %v1510 = vlaneseq
    %v1511 = vshrl.u32 %v1510, 7
    %v1512 = vsub.s32 0, %v1511
    %v1513 = vrot.slane %v1508, %v1512
    %v1547 = vunpack.c.l.b16 %v1476
    %v1548 = vunpack.c.l.b16 %v1477
    %v1549 = vunpack.c.l.b16 %v1478
    %v1550 = vunpack.c.l.b16 %v1479
    %v1551 = vunpack.c.l.b16 %v1480
    %v1552 = vunpack.c.l.b16 %v1481
    %v1553 = vunpack.c.l.b16 %v1482
    %v1554 = vunpack.c.l.b16 %v1483
    %v1555 = vunpack.c.l.b16 %v1484
    %v1556 = vunpack.c.l.b16 %v1485
    %v1557 = vunpack.c.l.b16 %v1486
    %v1558 = vunpack.c.l.b16 %v1487
    %v1559 = vunpack.c.l.b16 %v1488
    %v1560 = vunpack.c.l.b16 %v1489
    %v1561 = vunpack.c.l.b16 %v1490
    %v1562 = vunpack.c.l.b16 %v1491
    %v1563 = vunpack.c.l.b16 %v1492
    %v1564 = vunpack.c.l.b16 %v1493
    %v1565 = vunpack.c.l.b16 %v1494
    %v1566 = vunpack.c.l.b16 %v1495
    %v1567 = vunpack.c.l.b16 %v1496
    %v1568 = vunpack.c.l.b16 %v1497
    %v1569 = vunpack.c.l.b16 %v1498
    %v1570 = vunpack.c.l.b16 %v1499
    %v1571 = vunpack.c.l.b16 %v1500
    %v1572 = vunpack.c.l.b16 %v1501
    %v1573 = vunpack.c.l.b16 %v1502
    %v1574 = vunpack.c.l.b16 %v1503
    %v1575 = vunpack.c.l.b16 %v1504
    %v1576 = vunpack.c.l.b16 %v1505
    %v1577 = vunpack.c.l.b16 %v1506
    %v1578 = vunpack.c.l.b16 %v1507
    %v1579 = vpack.c.b16 %v1548, %v1547
    %v1580 = vpack.c.b16 %v1550, %v1549
    %v1581 = vpack.c.b16 %v1552, %v1551
    %v1582 = vpack.c.b16 %v1554, %v1553
    %v1583 = vpack.c.b16 %v1556, %v1555
    %v1584 = vpack.c.b16 %v1558, %v1557
    %v1585 = vpack.c.b16 %v1560, %v1559
    %v1586 = vpack.c.b16 %v1562, %v1561
    %v1587 = vpack.c.b16 %v1564, %v1563
    %v1588 = vpack.c.b16 %v1566, %v1565
    %v1589 = vpack.c.b16 %v1568, %v1567
    %v1590 = vpack.c.b16 %v1570, %v1569
    %v1591 = vpack.c.b16 %v1572, %v1571
    %v1592 = vpack.c.b16 %v1574, %v1573
    %v1593 = vpack.c.b16 %v1576, %v1575
    %v1594 = vpack.c.b16 %v1578, %v1577
    %1611 = vmatprep.subr.bf16.mxu0 0
    %1612 = vmatpush1.bf16.msra.mxu0 %v1586
    %1613 = vmatprep.subr.bf16.mxu0 0
    %1614 = vmatpush1.bf16.msra.mxu0 %v1585
    %1615 = vmatprep.subr.bf16.mxu0 0
    %1616 = vmatpush1.bf16.msra.mxu0 %v1584
    %1617 = vmatprep.subr.bf16.mxu0 0
    %1618 = vmatpush1.bf16.msra.mxu0 %v1583
    %1619 = vmatprep.subr.bf16.mxu0 0
    %1620 = vmatpush1.bf16.msra.mxu0 %v1582
    %1621 = vmatprep.subr.bf16.mxu0 0
    %1622 = vmatpush1.bf16.msra.mxu0 %v1581
    %1623 = vmatprep.subr.bf16.mxu0 0
    %1624 = vmatpush1.bf16.msra.mxu0 %v1580
    %1625 = vmatprep.subr.bf16.mxu0 0
    %1626 = vmatpush1.bf16.msra.mxu0 %v1579
    %1627 = vmatprep.subr.bf16.mxu0 0
    %1628 = vmatpush2.bf16.msra.mxu0 %v1594
    %1629 = vmatprep.subr.bf16.mxu0 0
    %1630 = vmatpush2.bf16.msra.mxu0 %v1593
    %1631 = vmatprep.subr.bf16.mxu0 0
    %1632 = vmatpush2.bf16.msra.mxu0 %v1592
    %1633 = vmatprep.subr.bf16.mxu0 0
    %1634 = vmatpush2.bf16.msra.mxu0 %v1591
    %1635 = vmatprep.subr.bf16.mxu0 0
    %1636 = vmatpush2.bf16.msra.mxu0 %v1590
    %1637 = vmatprep.subr.bf16.mxu0 0
    %1638 = vmatpush2.bf16.msra.mxu0 %v1589
    %1639 = vmatprep.subr.bf16.mxu0 0
    %1640 = vmatpush2.bf16.msra.mxu0 %v1588
    %1641 = vmatprep.subr.bf16.mxu0 0
    %1642 = vmatpush2.bf16.msra.mxu0 %v1587
    %1643 = vmatprep.mubr.bf16.mxu0 %v1475
    %1644 = vmatmul.mubr.bf16.gmra.mxu0 %v1474
    %v1645 = vpop.f32.mrf.mxu0
    %v1646 = vadd.f32 %v1513, %v1645
    %v1647 = vpop.f32.mrf.mxu0
    %v1648 = vpop.f32.mrf.mxu0
    %v1649 = vadd.f32 %v1513, %v1648
    %v1650 = vpop.f32.mrf.mxu0
    %1651 = vdwg.mxu0
    %v1652 = vadd.f32 %v1317, %v1646
    %v1653 = vadd.f32 %v1318, %v1649
    %1654 = vst.msk [vmem:[#allocation2] sm:$0xff] %vm47, %v1652
    %1655 = vst.msk [vmem:[#allocation2 + $0x8] sm:$0xff] %vm47, %v1653
    // Predicated region
    $region50: #{tpu_custom_call.1} parent=1 // pred_check
      _
    $region51: #{tpu_custom_call.1} parent=1 // pred_check_branch
      %1657 = sbr.rel (0) target = $region53
    $region52: #{tpu_custom_call.1} parent=1 // pred_region
      %s1659 = ssub.s32 256, 256
      %1660 = vsyncadd [#allocation3], %s1659
      %s1661 = sshll.u32 [#allocation2], 4
      %s1662 = int_to_ptr.vmem [resolvable:$true] %s1661
      %1667 = dma.vmem_to_hbm [thread:$0]  %s1662, 256, %s12, [#allocation3], 128, 128, 8
    $region53: #{tpu_custom_call.1} parent=1 // pred_fallthru
      _
    // Predicated region
    $region54: #{tpu_custom_call.1} parent=1 // pred_check
      _
    $region55: #{tpu_custom_call.1} parent=1 // pred_check_branch
      %1669 = sbr.rel (0) target = $region57
    $region56: #{tpu_custom_call.1} parent=1 // pred_region
      %1670 = dma.done [#allocation3], 256
    $region57: #{tpu_custom_call.1} parent=1 // pred_fallthru
      _
    %1671 = vsyncpa [#allocation3], 1

</llo_original>
